<compile_context>
chip_gen: v6e
topology: v6e:2x2x1
jax: 0.10.0
libtpu: 0.0.40
codegen_flags: <defaults>
</compile_context>

<pallas_src>
import functools
import math

import numpy as np

import jax
import jax.numpy as jnp
from jax.experimental import pallas as pl
from jax.experimental.pallas import tpu as pltpu

NUM_ENCODING_FUNCTIONS = 6
ENCODER_DIM = 32
D_X, D_Q, D_POSE = 3, 4, 7            # translation / quaternion / full pose widths
NF = NUM_ENCODING_FUNCTIONS
HALF_ENC = D_POSE * NF                # 42 (sin half == cos half)
SINCOS_DIM = 2 * HALF_ENC             # 84
MAX_TB = 1024                         # batch tile (multiple of 8; v5e-safe; v6e can use 2048)


# ---------------------------------------------------------------------------
# Kernel: MXU-built positional encoding + fused (block-diagonal) 4-layer MLP.
# ---------------------------------------------------------------------------
def _fused_pose_kernel(pose_ref, r_ref, phase_ref,
                       w1a, w1b, b1, w2, b2, w3, b3, w4, b4, out_ref):
    pose = pose_ref[...]                                     # [TB, 7] f32

    # Frequency expansion on the MXU, f32-exact via a hi/lo bf16 split:
    #   xf[:, j*7+f]        = pose[:, f] * 2**j              (sin half)
    #   xf[:, 42 + j*7+f]   = pose[:, f] * 2**j + pi/2       (cos half, cos(x)=sin(x+pi/2))
    pose_hi = pose.astype(jnp.bfloat16)
    pose_lo = (pose - pose_hi.astype(jnp.float32)).astype(jnp.bfloat16)
    r = r_ref[...]                                           # [7, 84] bf16 (exact powers of 2)
    xf = (jnp.dot(pose_hi, r, preferred_element_type=jnp.float32)
          + jnp.dot(pose_lo, r, preferred_element_type=jnp.float32)
          + phase_ref[...])                                  # [TB, 84] f32
    sincos = jnp.sin(xf)                                     # single transcendental slab

    # Fused block-diagonal MLP: bf16 operands, f32 accumulation.
    h = (jnp.dot(pose_hi, w1a[...], preferred_element_type=jnp.float32)
         + jnp.dot(sincos.astype(jnp.bfloat16), w1b[...],
                   preferred_element_type=jnp.float32)
         + b1[...])
    h = jnp.maximum(h, 0.0)
    h = jnp.maximum(jnp.dot(h.astype(jnp.bfloat16), w2[...],
                            preferred_element_type=jnp.float32) + b2[...], 0.0)
    h = jnp.maximum(jnp.dot(h.astype(jnp.bfloat16), w3[...],
                            preferred_element_type=jnp.float32) + b3[...], 0.0)
    out = jnp.dot(h.astype(jnp.bfloat16), w4[...],
                  preferred_element_type=jnp.float32) + b4[...]
    out_ref[...] = out.astype(out_ref.dtype)                 # [TB, 128] lane-dense


# ---------------------------------------------------------------------------
# One-time host-side parameter fusion (call once at init, NOT per forward).
# ---------------------------------------------------------------------------
def _block_diag(a, b):
    out = jnp.zeros((a.shape[0] + b.shape[0], a.shape[1] + b.shape[1]), jnp.float32)
    out = out.at[: a.shape[0], : a.shape[1]].set(a)
    out = out.at[a.shape[0]:, a.shape[1]:].set(b)
    return out


def _make_freq_constants():
    """R: [7, 84] with R[f, j*7+f] = 2^j in both halves; phase: 0 | pi/2 row."""
    r = np.zeros((D_POSE, SINCOS_DIM), np.float32)
    for j in range(NF):
        for f in range(D_POSE):
            r[f, j * D_POSE + f] = 2.0 ** j
            r[f, HALF_ENC + j * D_POSE + f] = 2.0 ** j
    phase = np.zeros((1, SINCOS_DIM), np.float32)
    phase[:, HALF_ENC:] = np.float32(math.pi / 2.0)
    return jnp.asarray(r, jnp.bfloat16), jnp.asarray(phase, jnp.float32)


def _fuse_first_layer(w1x, w1q):
    """Split/permute the two first-layer weights into:
         w1a [7, 128]  : rows for the raw pose pass-through features,
         w1b [84, 128] : rows for [sin-by-freq(42) | cos-by-freq(42)],
       matching the kernel's xf/sincos lane layout.  Branch weight row order is
       [x(d), sin(x*2^0)(d), cos(x*2^0)(d), ..., cos(x*2^5)(d)]."""
    cx, cq = w1x.shape[1], w1q.shape[1]
    w1a = jnp.zeros((D_POSE, cx + cq), jnp.float32)
    w1b = jnp.zeros((SINCOS_DIM, cx + cq), jnp.float32)
    w1a = w1a.at[0:D_X, :cx].set(w1x[0:D_X])
    w1a = w1a.at[D_X:D_POSE, cx:].set(w1q[0:D_Q])
    for j in range(NF):
        src_x = D_X + 2 * D_X * j
        src_q = D_Q + 2 * D_Q * j
        s = j * D_POSE
        c = HALF_ENC + j * D_POSE
        # sin rows
        w1b = w1b.at[s:s + D_X, :cx].set(w1x[src_x:src_x + D_X])
        w1b = w1b.at[s + D_X:s + D_POSE, cx:].set(w1q[src_q:src_q + D_Q])
        # cos rows
        w1b = w1b.at[c:c + D_X, :cx].set(w1x[src_x + D_X:src_x + 2 * D_X])
        w1b = w1b.at[c + D_X:c + D_POSE, cx:].set(w1q[src_q + D_Q:src_q + 2 * D_Q])
    return w1a, w1b


def fuse_pose_encoder_params(x_params, q_params):
    """Pack the two branch MLPs block-diagonally, cast weights to bf16, and pad
    the final layer to a lane-dense 128-column output.  Do this ONCE at init."""
    w1x, b1x, w2x, b2x, w3x, b3x, w4x, b4x = x_params
    w1q, b1q, w2q, b2q, w3q, b3q, w4q, b4q = q_params

    r, phase = _make_freq_constants()
    w1a, w1b = _fuse_first_layer(w1x, w1q)
    b1 = jnp.concatenate([b1x, b1q], axis=-1)
    w2 = _block_diag(w2x, w2q); b2 = jnp.concatenate([b2x, b2q], axis=-1)
    w3 = _block_diag(w3x, w3q); b3 = jnp.concatenate([b3x, b3q], axis=-1)
    w4 = _block_diag(w4x, w4q); b4 = jnp.concatenate([b4x, b4q], axis=-1)

    # Pad final layer to a multiple of 128 output columns (lane-dense stores).
    out_cols = w4.shape[1]
    padded = ((out_cols + 127) // 128) * 128
    if padded != out_cols:
        w4 = jnp.pad(w4, ((0, 0), (0, padded - out_cols)))
        b4 = jnp.pad(b4, ((0, 0), (0, padded - out_cols)))

    bf16 = lambda w: w.astype(jnp.bfloat16)
    f32 = lambda b: b.astype(jnp.float32)
    return (r, phase,
            bf16(w1a), bf16(w1b), f32(b1),
            bf16(w2), f32(b2),
            bf16(w3), f32(b3),
            bf16(w4), f32(b4))


# ---------------------------------------------------------------------------
# Forward wrapper: a single pallas_call over a batch grid.
# ---------------------------------------------------------------------------
def _pick_batch_tile(batch):
    if batch >= 2 * MAX_TB:
        return MAX_TB
    # Ensure >= 2 grid steps when possible so the "parallel" axis can shard across
    # v7x's two TensorCores; keep the tile a multiple of 8 sublanes.
    half = -(-batch // 2)
    tb = ((half + 7) // 8) * 8
    return max(8, min(tb, MAX_TB))


@functools.partial(jax.jit, static_argnames=("encoder_dim",))
def pose_encoder_forward(pose, fused_params, encoder_dim=ENCODER_DIM):
    """pose: [B, 7] = [tx, ty, tz, qx, qy, qz, qw] -> (latent_x, latent_q)."""
    B = pose.shape[0]
    TB = _pick_batch_tile(B)
    grid = (pl.cdiv(B, TB),)
    out_cols = fused_params[-2].shape[1]          # lane-padded w4 width (128)

    const_specs = [pl.BlockSpec(p.shape, lambda i: (0, 0)) for p in fused_params]

    out = pl.pallas_call(
        _fused_pose_kernel,
        out_shape=jax.ShapeDtypeStruct((B, out_cols), jnp.float32),
        grid=grid,
        in_specs=[pl.BlockSpec((TB, D_POSE), lambda i: (i, 0))] + const_specs,
        out_specs=pl.BlockSpec((TB, out_cols), lambda i: (i, 0)),
        compiler_params=pltpu.CompilerParams(
            dimension_semantics=("parallel",),
            vmem_limit_bytes=32 * 1024 * 1024),
    )(pose, *fused_params)

    return out[:, :encoder_dim], out[:, encoder_dim:2 * encoder_dim]


# ---------------------------------------------------------------------------
# Parameter init (mirrors PyTorch: xavier-uniform weights, Linear-default bias).
# ---------------------------------------------------------------------------
def _xavier_uniform(key, fan_in, fan_out):
    limit = math.sqrt(6.0 / (fan_in + fan_out))
    return jax.random.uniform(key, (fan_in, fan_out), jnp.float32,
                              minval=-limit, maxval=limit)


def _linear_bias(key, fan_in, fan_out):
    bound = 1.0 / math.sqrt(fan_in)
    return jax.random.uniform(key, (1, fan_out), jnp.float32,
                              minval=-bound, maxval=bound)


def make_mlp_params(key, in_dim, encoder_dim):
    """Deep MLP: in -> 64 -> 128 -> 256 -> encoder_dim, weights stored (in, out)."""
    dims = [in_dim, 64, 128, 256, encoder_dim]
    params = []
    keys = jax.random.split(key, 2 * (len(dims) - 1))
    for i in range(len(dims) - 1):
        params.append(_xavier_uniform(keys[2 * i], dims[i], dims[i + 1]))
        params.append(_linear_bias(keys[2 * i + 1], dims[i], dims[i + 1]))
    return tuple(params)


# ---------------------------------------------------------------------------
# Pure-JAX reference (mirrors the PyTorch module) for a correctness check.
# ---------------------------------------------------------------------------
def _positional_encoding_ref(x):
    parts = [x]
    freqs = 2.0 ** jnp.linspace(0.0, NF - 1, NF, dtype=jnp.float32)
    for j in range(NF):
        parts.append(jnp.sin(x * freqs[j]))
        parts.append(jnp.cos(x * freqs[j]))
    return jnp.concatenate(parts, axis=-1)


def _mlp_ref(x, params):
    w1, b1, w2, b2, w3, b3, w4, b4 = params
    h = jnp.maximum(x @ w1 + b1, 0.0)
    h = jnp.maximum(h @ w2 + b2, 0.0)
    h = jnp.maximum(h @ w3 + b3, 0.0)
    return h @ w4 + b4


def pose_encoder_ref(pose, x_params, q_params):
    return (_mlp_ref(_positional_encoding_ref(pose[:, :3]), x_params),
            _mlp_ref(_positional_encoding_ref(pose[:, 3:]), q_params))


if __name__ == "__main__":
    key = jax.random.PRNGKey(0)
    k_pose, k_x, k_q, k_pose2 = jax.random.split(key, 4)

    x_dim = D_X + NF * D_X * 2   # 39
    q_dim = D_Q + NF * D_Q * 2   # 52
    x_params = make_mlp_params(k_x, x_dim, ENCODER_DIM)
    q_params = make_mlp_params(k_q, q_dim, ENCODER_DIM)

    # One-time fusion (hoisted out of the forward pass).
    fused = fuse_pose_encoder_params(x_params, q_params)
    jax.block_until_ready(fused)

    # Small batch: single grid step, block larger than batch (masked writeback).
    B = 2
    pose = jax.random.normal(k_pose, (B, D_POSE), dtype=jnp.float32)
    latent_x, latent_q = pose_encoder_forward(pose, fused)
    jax.block_until_ready((latent_x, latent_q))
    assert latent_x.shape == (B, ENCODER_DIM)
    assert latent_q.shape == (B, ENCODER_DIM)
    ref_x, ref_q = pose_encoder_ref(pose, x_params, q_params)
    assert jnp.allclose(latent_x, ref_x, atol=1e-2, rtol=1e-2)
    assert jnp.allclose(latent_q, ref_q, atol=1e-2, rtol=1e-2)

    # Ragged multi-step batch: 2 grid steps, last tile only partially valid.
    B2 = 50
    pose2 = jax.random.normal(k_pose2, (B2, D_POSE), dtype=jnp.float32)
    lx2, lq2 = pose_encoder_forward(pose2, fused)
    jax.block_until_ready((lx2, lq2))
    rx2, rq2 = pose_encoder_ref(pose2, x_params, q_params)
    assert jnp.allclose(lx2, rx2, atol=1e-2, rtol=1e-2)
    assert jnp.allclose(lq2, rq2, atol=1e-2, rtol=1e-2)

    print("KERNEL_OK")
</pallas_src>

<mosaic_0001>
module attributes {stable_mosaic.version = 11 : i64} {
  func.func @_fused_pose_kernel(%arg0: i32, %arg1: memref<8x7xf32, #tpu.memory_space<vmem>>, %arg2: memref<7x84xbf16, #tpu.memory_space<vmem>>, %arg3: memref<1x84xf32, #tpu.memory_space<vmem>>, %arg4: memref<7x128xbf16, #tpu.memory_space<vmem>>, %arg5: memref<84x128xbf16, #tpu.memory_space<vmem>>, %arg6: memref<1x128xf32, #tpu.memory_space<vmem>>, %arg7: memref<128x256xbf16, #tpu.memory_space<vmem>>, %arg8: memref<1x256xf32, #tpu.memory_space<vmem>>, %arg9: memref<256x512xbf16, #tpu.memory_space<vmem>>, %arg10: memref<1x512xf32, #tpu.memory_space<vmem>>, %arg11: memref<512x128xbf16, #tpu.memory_space<vmem>>, %arg12: memref<1x128xf32, #tpu.memory_space<vmem>>, %arg13: memref<8x128xf32, #tpu.memory_space<vmem>>) attributes {dimension_semantics = [#tpu.dimension_semantics<parallel>], iteration_bounds = array<i64: 1>, scalar_prefetch = 0 : i64, scratch_operands = 0 : i64, tpu.core_type = #tpu.core_type<tc>, window_params = [{transform_indices = @transform_0, window_bounds = array<i64: 8, 7>}, {pipeline_mode = #tpu.pipeline_mode<synchronous>, transform_indices = @transform_1, window_bounds = array<i64: 7, 84>}, {pipeline_mode = #tpu.pipeline_mode<synchronous>, transform_indices = @transform_2, window_bounds = array<i64: 1, 84>}, {pipeline_mode = #tpu.pipeline_mode<synchronous>, transform_indices = @transform_3, window_bounds = array<i64: 7, 128>}, {pipeline_mode = #tpu.pipeline_mode<synchronous>, transform_indices = @transform_4, window_bounds = array<i64: 84, 128>}, {pipeline_mode = #tpu.pipeline_mode<synchronous>, transform_indices = @transform_5, window_bounds = array<i64: 1, 128>}, {pipeline_mode = #tpu.pipeline_mode<synchronous>, transform_indices = @transform_6, window_bounds = array<i64: 128, 256>}, {pipeline_mode = #tpu.pipeline_mode<synchronous>, transform_indices = @transform_7, window_bounds = array<i64: 1, 256>}, {pipeline_mode = #tpu.pipeline_mode<synchronous>, transform_indices = @transform_8, window_bounds = array<i64: 256, 512>}, {pipeline_mode = #tpu.pipeline_mode<synchronous>, transform_indices = @transform_9, window_bounds = array<i64: 1, 512>}, {pipeline_mode = #tpu.pipeline_mode<synchronous>, transform_indices = @transform_10, window_bounds = array<i64: 512, 128>}, {pipeline_mode = #tpu.pipeline_mode<synchronous>, transform_indices = @transform_11, window_bounds = array<i64: 1, 128>}, {transform_indices = @transform_12, window_bounds = array<i64: 8, 128>}]} {
    %c0 = arith.constant 0 : index
    %c0_0 = arith.constant 0 : index
    %0 = vector.load %arg1[%c0, %c0_0] : memref<8x7xf32, #tpu.memory_space<vmem>>, vector<8x7xf32>
    %1 = arith.truncf %0 : vector<8x7xf32> to vector<8x7xbf16>
    %2 = arith.extf %1 : vector<8x7xbf16> to vector<8x7xf32>
    %3 = arith.subf %0, %2 : vector<8x7xf32>
    %4 = arith.truncf %3 : vector<8x7xf32> to vector<8x7xbf16>
    %c0_1 = arith.constant 0 : index
    %c0_2 = arith.constant 0 : index
    %5 = vector.load %arg2[%c0_1, %c0_2] : memref<7x84xbf16, #tpu.memory_space<vmem>>, vector<7x84xbf16>
    %cst = arith.constant dense<0.000000e+00> : vector<8x84xf32>
    %6 = tpu.matmul %1, %5, %cst {dimension_numbers = #tpu.dot_dimension_numbers<[1], [0], [0], [1], [0, 0, 1, 1], [], []>} : vector<8x7xbf16>, vector<7x84xbf16>, vector<8x84xf32> -> vector<8x84xf32>
    %cst_3 = arith.constant dense<0.000000e+00> : vector<8x84xf32>
    %7 = tpu.matmul %4, %5, %cst_3 {dimension_numbers = #tpu.dot_dimension_numbers<[1], [0], [0], [1], [0, 0, 1, 1], [], []>} : vector<8x7xbf16>, vector<7x84xbf16>, vector<8x84xf32> -> vector<8x84xf32>
    %8 = arith.addf %6, %7 : vector<8x84xf32>
    %c0_4 = arith.constant 0 : index
    %c0_5 = arith.constant 0 : index
    %9 = vector.load %arg3[%c0_4, %c0_5] : memref<1x84xf32, #tpu.memory_space<vmem>>, vector<1x84xf32>
    %10 = vector.broadcast %9 : vector<1x84xf32> to vector<8x84xf32>
    %11 = arith.addf %8, %10 : vector<8x84xf32>
    %12 = math.sin %11 : vector<8x84xf32>
    %c0_6 = arith.constant 0 : index
    %c0_7 = arith.constant 0 : index
    %13 = vector.load %arg4[%c0_6, %c0_7] : memref<7x128xbf16, #tpu.memory_space<vmem>>, vector<7x128xbf16>
    %cst_8 = arith.constant dense<0.000000e+00> : vector<8x128xf32>
    %14 = tpu.matmul %1, %13, %cst_8 {dimension_numbers = #tpu.dot_dimension_numbers<[1], [0], [0], [1], [0, 0, 1, 1], [], []>} : vector<8x7xbf16>, vector<7x128xbf16>, vector<8x128xf32> -> vector<8x128xf32>
    %15 = arith.truncf %12 : vector<8x84xf32> to vector<8x84xbf16>
    %c0_9 = arith.constant 0 : index
    %c0_10 = arith.constant 0 : index
    %16 = vector.load %arg5[%c0_9, %c0_10] : memref<84x128xbf16, #tpu.memory_space<vmem>>, vector<84x128xbf16>
    %cst_11 = arith.constant dense<0.000000e+00> : vector<8x128xf32>
    %17 = tpu.matmul %15, %16, %cst_11 {dimension_numbers = #tpu.dot_dimension_numbers<[1], [0], [0], [1], [0, 0, 1, 1], [], []>} : vector<8x84xbf16>, vector<84x128xbf16>, vector<8x128xf32> -> vector<8x128xf32>
    %18 = arith.addf %14, %17 : vector<8x128xf32>
    %c0_12 = arith.constant 0 : index
    %c0_13 = arith.constant 0 : index
    %19 = vector.load %arg6[%c0_12, %c0_13] : memref<1x128xf32, #tpu.memory_space<vmem>>, vector<1x128xf32>
    %20 = vector.broadcast %19 : vector<1x128xf32> to vector<8x128xf32>
    %21 = arith.addf %18, %20 : vector<8x128xf32>
    %cst_14 = arith.constant 0.000000e+00 : f32
    %22 = vector.broadcast %cst_14 : f32 to vector<8x128xf32>
    %23 = arith.maximumf %21, %22 : vector<8x128xf32>
    %24 = arith.truncf %23 : vector<8x128xf32> to vector<8x128xbf16>
    %c0_15 = arith.constant 0 : index
    %c0_16 = arith.constant 0 : index
    %25 = vector.load %arg7[%c0_15, %c0_16] : memref<128x256xbf16, #tpu.memory_space<vmem>>, vector<128x256xbf16>
    %cst_17 = arith.constant dense<0.000000e+00> : vector<8x256xf32>
    %26 = tpu.matmul %24, %25, %cst_17 {dimension_numbers = #tpu.dot_dimension_numbers<[1], [0], [0], [1], [0, 0, 1, 1], [], []>} : vector<8x128xbf16>, vector<128x256xbf16>, vector<8x256xf32> -> vector<8x256xf32>
    %c0_18 = arith.constant 0 : index
    %c0_19 = arith.constant 0 : index
    %27 = vector.load %arg8[%c0_18, %c0_19] : memref<1x256xf32, #tpu.memory_space<vmem>>, vector<1x256xf32>
    %28 = vector.broadcast %27 : vector<1x256xf32> to vector<8x256xf32>
    %29 = arith.addf %26, %28 : vector<8x256xf32>
    %cst_20 = arith.constant 0.000000e+00 : f32
    %30 = vector.broadcast %cst_20 : f32 to vector<8x256xf32>
    %31 = arith.maximumf %29, %30 : vector<8x256xf32>
    %32 = arith.truncf %31 : vector<8x256xf32> to vector<8x256xbf16>
    %c0_21 = arith.constant 0 : index
    %c0_22 = arith.constant 0 : index
    %33 = vector.load %arg9[%c0_21, %c0_22] : memref<256x512xbf16, #tpu.memory_space<vmem>>, vector<256x512xbf16>
    %cst_23 = arith.constant dense<0.000000e+00> : vector<8x512xf32>
    %34 = tpu.matmul %32, %33, %cst_23 {dimension_numbers = #tpu.dot_dimension_numbers<[1], [0], [0], [1], [0, 0, 1, 1], [], []>} : vector<8x256xbf16>, vector<256x512xbf16>, vector<8x512xf32> -> vector<8x512xf32>
    %c0_24 = arith.constant 0 : index
    %c0_25 = arith.constant 0 : index
    %35 = vector.load %arg10[%c0_24, %c0_25] : memref<1x512xf32, #tpu.memory_space<vmem>>, vector<1x512xf32>
    %36 = vector.broadcast %35 : vector<1x512xf32> to vector<8x512xf32>
    %37 = arith.addf %34, %36 : vector<8x512xf32>
    %cst_26 = arith.constant 0.000000e+00 : f32
    %38 = vector.broadcast %cst_26 : f32 to vector<8x512xf32>
    %39 = arith.maximumf %37, %38 : vector<8x512xf32>
    %40 = arith.truncf %39 : vector<8x512xf32> to vector<8x512xbf16>
    %c0_27 = arith.constant 0 : index
    %c0_28 = arith.constant 0 : index
    %41 = vector.load %arg11[%c0_27, %c0_28] : memref<512x128xbf16, #tpu.memory_space<vmem>>, vector<512x128xbf16>
    %cst_29 = arith.constant dense<0.000000e+00> : vector<8x128xf32>
    %42 = tpu.matmul %40, %41, %cst_29 {dimension_numbers = #tpu.dot_dimension_numbers<[1], [0], [0], [1], [0, 0, 1, 1], [], []>} : vector<8x512xbf16>, vector<512x128xbf16>, vector<8x128xf32> -> vector<8x128xf32>
    %c0_30 = arith.constant 0 : index
    %c0_31 = arith.constant 0 : index
    %43 = vector.load %arg12[%c0_30, %c0_31] : memref<1x128xf32, #tpu.memory_space<vmem>>, vector<1x128xf32>
    %44 = vector.broadcast %43 : vector<1x128xf32> to vector<8x128xf32>
    %45 = arith.addf %42, %44 : vector<8x128xf32>
    %c0_32 = arith.constant 0 : index
    %c0_33 = arith.constant 0 : index
    %46 = vector.load %arg13[%c0_32, %c0_33] : memref<8x128xf32, #tpu.memory_space<vmem>>, vector<8x128xf32>
    tpu.vector_store %arg13[%c0_32, %c0_33], %45 {strides = array<i32>} : memref<8x128xf32, #tpu.memory_space<vmem>>, vector<8x128xf32>,
    return
  }
  func.func @transform_0(%arg0: i32) -> (i32, i32) {
    %c0_i32 = arith.constant 0 : i32
    %c0_i32_0 = arith.constant 0 : i32
    return %arg0, %c0_i32 : i32, i32
  }
  func.func @transform_1(%arg0: i32) -> (i32, i32) {
    %c0_i32 = arith.constant 0 : i32
    %c0_i32_0 = arith.constant 0 : i32
    %c0_i32_1 = arith.constant 0 : i32
    return %c0_i32, %c0_i32_0 : i32, i32
  }
  func.func @transform_2(%arg0: i32) -> (i32, i32) {
    %c0_i32 = arith.constant 0 : i32
    %c0_i32_0 = arith.constant 0 : i32
    %c0_i32_1 = arith.constant 0 : i32
    return %c0_i32, %c0_i32_0 : i32, i32
  }
  func.func @transform_3(%arg0: i32) -> (i32, i32) {
    %c0_i32 = arith.constant 0 : i32
    %c0_i32_0 = arith.constant 0 : i32
    %c0_i32_1 = arith.constant 0 : i32
    return %c0_i32, %c0_i32_0 : i32, i32
  }
  func.func @transform_4(%arg0: i32) -> (i32, i32) {
    %c0_i32 = arith.constant 0 : i32
    %c0_i32_0 = arith.constant 0 : i32
    %c0_i32_1 = arith.constant 0 : i32
    return %c0_i32, %c0_i32_0 : i32, i32
  }
  func.func @transform_5(%arg0: i32) -> (i32, i32) {
    %c0_i32 = arith.constant 0 : i32
    %c0_i32_0 = arith.constant 0 : i32
    %c0_i32_1 = arith.constant 0 : i32
    return %c0_i32, %c0_i32_0 : i32, i32
  }
  func.func @transform_6(%arg0: i32) -> (i32, i32) {
    %c0_i32 = arith.constant 0 : i32
    %c0_i32_0 = arith.constant 0 : i32
    %c0_i32_1 = arith.constant 0 : i32
    return %c0_i32, %c0_i32_0 : i32, i32
  }
  func.func @transform_7(%arg0: i32) -> (i32, i32) {
    %c0_i32 = arith.constant 0 : i32
    %c0_i32_0 = arith.constant 0 : i32
    %c0_i32_1 = arith.constant 0 : i32
    return %c0_i32, %c0_i32_0 : i32, i32
  }
  func.func @transform_8(%arg0: i32) -> (i32, i32) {
    %c0_i32 = arith.constant 0 : i32
    %c0_i32_0 = arith.constant 0 : i32
    %c0_i32_1 = arith.constant 0 : i32
    return %c0_i32, %c0_i32_0 : i32, i32
  }
  func.func @transform_9(%arg0: i32) -> (i32, i32) {
    %c0_i32 = arith.constant 0 : i32
    %c0_i32_0 = arith.constant 0 : i32
    %c0_i32_1 = arith.constant 0 : i32
    return %c0_i32, %c0_i32_0 : i32, i32
  }
  func.func @transform_10(%arg0: i32) -> (i32, i32) {
    %c0_i32 = arith.constant 0 : i32
    %c0_i32_0 = arith.constant 0 : i32
    %c0_i32_1 = arith.constant 0 : i32
    return %c0_i32, %c0_i32_0 : i32, i32
  }
  func.func @transform_11(%arg0: i32) -> (i32, i32) {
    %c0_i32 = arith.constant 0 : i32
    %c0_i32_0 = arith.constant 0 : i32
    %c0_i32_1 = arith.constant 0 : i32
    return %c0_i32, %c0_i32_0 : i32, i32
  }
  func.func @transform_12(%arg0: i32) -> (i32, i32) {
    %c0_i32 = arith.constant 0 : i32
    %c0_i32_0 = arith.constant 0 : i32
    return %arg0, %c0_i32 : i32, i32
  }
}

</mosaic_0001>

<llo_original>
// kernel: pose_encoder_forward.1
$region0: #{pose_encoder_forward.1}
  #allocation0 [shape = 'u32[]', space=smem, size = 0x4, offset = 0x4, fixed_abs, tag = 'smem constant byte address 0x4 - core index']
  #allocation1 [shape = 'u32[144,128]{1,0:T(1,128)}', space=vmem, size = 0x12000, scoped, tag = 'internal scratch']
  %s0 = inlined_call_operand.hbm [shape: f32[2,7], index: 0, kind: input, shape index: {}]
  %s1 = inlined_call_operand.hbm [shape: bf16[7,84], index: 1, kind: input, shape index: {}]
  %s2 = inlined_call_operand.hbm [shape: f32[1,84], index: 2, kind: input, shape index: {}]
  %s3 = inlined_call_operand.vmem [shape: bf16[7,128], index: 3, kind: input, shape index: {}]
  %s4 = inlined_call_operand.hbm [shape: bf16[84,128], index: 4, kind: input, shape index: {}]
  %s5 = inlined_call_operand.hbm [shape: f32[1,128], index: 5, kind: input, shape index: {}]
  %s6 = inlined_call_operand.hbm [shape: bf16[128,256], index: 6, kind: input, shape index: {}]
  %s7 = inlined_call_operand.vmem [shape: f32[1,256], index: 7, kind: input, shape index: {}]
  %s8 = inlined_call_operand.hbm [shape: bf16[256,512], index: 8, kind: input, shape index: {}]
  %s9 = inlined_call_operand.vmem [shape: f32[1,512], index: 9, kind: input, shape index: {}]
  %s10 = inlined_call_operand.hbm [shape: bf16[512,128], index: 10, kind: input, shape index: {}]
  %s11 = inlined_call_operand.vmem [shape: f32[1,128], index: 11, kind: input, shape index: {}]
  %s12 = inlined_call_operand.vmem [shape: f32[2,128], index: 12, kind: output, shape index: {}]
  %s13 = sld [smem:[#allocation0]]
  $region120: #{pose_encoder_forward.1} parent=0
    _
  %s15 = ssub.s32 1, %s13
  %s16 = scalar_select 0, %s15, %s13
  $region1: #{pose_encoder_forward.1} parent=0
    #allocation2 [shape = 'u8[4096]{0}', space=vmem, size = 0x1000, scoped, tag = 'input window, operand 0, single buffered']
    #allocation3 [shape = 's32[1]{0}', space=sflag, size = 0x4, scoped, tag = 'scoped memory for pose_encoder_forward.1']
    #allocation4 [shape = 'u8[2048]{0}', space=vmem, size = 0x800, scoped, tag = 'input window, operand 1, single buffered']
    #allocation5 [shape = 's32[1]{0}', space=sflag, size = 0x4, scoped, tag = 'scoped memory for pose_encoder_forward.1']
    #allocation6 [shape = 'u8[512]{0}', space=vmem, size = 0x400, scoped, tag = 'input window, operand 2, single buffered']
    #allocation7 [shape = 'u8[22528]{0}', space=vmem, size = 0x5800, scoped, tag = 'input window, operand 4, single buffered']
    #allocation8 [shape = 's32[1]{0}', space=sflag, size = 0x4, scoped, tag = 'scoped memory for pose_encoder_forward.1']
    #allocation9 [shape = 'u8[512]{0}', space=vmem, size = 0x400, scoped, tag = 'input window, operand 5, single buffered']
    #allocation10 [shape = 'u8[65536]{0}', space=vmem, size = 0x10000, scoped, tag = 'input window, operand 6, single buffered']
    #allocation11 [shape = 's32[1]{0}', space=sflag, size = 0x4, scoped, tag = 'scoped memory for pose_encoder_forward.1']
    #allocation12 [shape = 'u8[262144]{0}', space=vmem, size = 0x40000, scoped, tag = 'input window, operand 8, single buffered']
    #allocation13 [shape = 'u8[131072]{0}', space=vmem, size = 0x20000, scoped, tag = 'input window, operand 10, single buffered']
    #allocation14 [shape = 's32[1]{0}', space=sflag, size = 0x4, scoped, tag = 'scoped memory for pose_encoder_forward.1']
    #allocation15 [shape = 'u8[4096]{0}', space=vmem, size = 0x1000, scoped, tag = 'output window, operand 0, single buffered']
    %17 = vsyncpa [#allocation3], 0
    %18 = vsyncpa [#allocation5], 0
    %19 = vsyncpa [#allocation8], 0
    %20 = vsyncpa [#allocation11], 0
    %21 = vsyncpa [#allocation14], 0
    // Predicated region
    $region2: #{pose_encoder_forward.1} parent=1 // pred_check
      _
    $region3: #{pose_encoder_forward.1} parent=1 // pred_check_branch
      %23 = sbr.rel (0) target = $region5
    $region4: #{pose_encoder_forward.1} parent=1 // pred_region
      %s25 = ssub.s32 128, 32
      %26 = vsyncadd [#allocation3], %s25
      %s27 = sshll.u32 [#allocation2], 4
      %s28 = int_to_ptr.vmem [resolvable:$true] %s27
      %33 = dma.hbm_to_vmem [thread:$0]  %s0, 32, %s28, [#allocation3], 32, 32, 2
    $region5: #{pose_encoder_forward.1} parent=1 // pred_fallthru
      _
    // Predicated region
    $region6: #{pose_encoder_forward.1} parent=1 // pred_check
      _
    $region7: #{pose_encoder_forward.1} parent=1 // pred_check_branch
      %35 = sbr.rel (0) target = $region9
    $region8: #{pose_encoder_forward.1} parent=1 // pred_region
      %s37 = ssub.s32 64, 64
      %38 = vsyncadd [#allocation5], %s37
      %s40 = sshll.u32 [#allocation4], 4
      %s41 = int_to_ptr.vmem [resolvable:$true] %s40
      %43 = dma.hbm_to_vmem [thread:$0]  %s1, 64, %s41, [#allocation5]
    $region9: #{pose_encoder_forward.1} parent=1 // pred_fallthru
      _
    // Predicated region
    $region10: #{pose_encoder_forward.1} parent=1 // pred_check
      _
    $region11: #{pose_encoder_forward.1} parent=1 // pred_check_branch
      %45 = sbr.rel (0) target = $region13
    $region12: #{pose_encoder_forward.1} parent=1 // pred_region
      %s47 = ssub.s32 16, 16
      %48 = vsyncadd [#allocation5], %s47
      %s50 = sshll.u32 [#allocation6], 4
      %s51 = int_to_ptr.vmem [resolvable:$true] %s50
      %53 = dma.hbm_to_vmem [thread:$0]  %s2, 16, %s51, [#allocation5]
    $region13: #{pose_encoder_forward.1} parent=1 // pred_fallthru
      _
    // Predicated region
    $region14: #{pose_encoder_forward.1} parent=1 // pred_check
      _
    $region15: #{pose_encoder_forward.1} parent=1 // pred_check_branch
      %55 = sbr.rel (0) target = $region17
    $region16: #{pose_encoder_forward.1} parent=1 // pred_region
      _
    $region17: #{pose_encoder_forward.1} parent=1 // pred_fallthru
      _
    // Predicated region
    $region18: #{pose_encoder_forward.1} parent=1 // pred_check
      _
    $region19: #{pose_encoder_forward.1} parent=1 // pred_check_branch
      %57 = sbr.rel (0) target = $region21
    $region20: #{pose_encoder_forward.1} parent=1 // pred_region
      %s59 = ssub.s32 704, 704
      %60 = vsyncadd [#allocation8], %s59
      %s61 = sshll.u32 [#allocation7], 4
      %s62 = int_to_ptr.vmem [resolvable:$true] %s61
      %67 = dma.hbm_to_vmem [thread:$0]  %s4, 704, %s62, [#allocation8], 64, 64, 4
    $region21: #{pose_encoder_forward.1} parent=1 // pred_fallthru
      _
    // Predicated region
    $region22: #{pose_encoder_forward.1} parent=1 // pred_check
      _
    $region23: #{pose_encoder_forward.1} parent=1 // pred_check_branch
      %69 = sbr.rel (0) target = $region25
    $region24: #{pose_encoder_forward.1} parent=1 // pred_region
      %s71 = ssub.s32 16, 16
      %72 = vsyncadd [#allocation8], %s71
      %s74 = sshll.u32 [#allocation9], 4
      %s75 = int_to_ptr.vmem [resolvable:$true] %s74
      %77 = dma.hbm_to_vmem [thread:$0]  %s5, 16, %s75, [#allocation8]
    $region25: #{pose_encoder_forward.1} parent=1 // pred_fallthru
      _
    // Predicated region
    $region26: #{pose_encoder_forward.1} parent=1 // pred_check
      _
    $region27: #{pose_encoder_forward.1} parent=1 // pred_check_branch
      %79 = sbr.rel (0) target = $region29
    $region28: #{pose_encoder_forward.1} parent=1 // pred_region
      %s81 = ssub.s32 2048, 2048
      %82 = vsyncadd [#allocation11], %s81
      %s83 = sshll.u32 [#allocation10], 4
      %s84 = int_to_ptr.vmem [resolvable:$true] %s83
      %89 = dma.hbm_to_vmem [thread:$0]  %s6, 2048, %s84, [#allocation11], 128, 128, 8
    $region29: #{pose_encoder_forward.1} parent=1 // pred_fallthru
      _
    // Predicated region
    $region30: #{pose_encoder_forward.1} parent=1 // pred_check
      _
    $region31: #{pose_encoder_forward.1} parent=1 // pred_check_branch
      %91 = sbr.rel (0) target = $region33
    $region32: #{pose_encoder_forward.1} parent=1 // pred_region
      _
    $region33: #{pose_encoder_forward.1} parent=1 // pred_fallthru
      _
    // Predicated region
    $region34: #{pose_encoder_forward.1} parent=1 // pred_check
      _
    $region35: #{pose_encoder_forward.1} parent=1 // pred_check_branch
      %93 = sbr.rel (0) target = $region37
    $region36: #{pose_encoder_forward.1} parent=1 // pred_region
      %s95 = ssub.s32 8192, 8192
      %96 = vsyncadd [#allocation11], %s95
      %s97 = sshll.u32 [#allocation12], 4
      %s98 = int_to_ptr.vmem [resolvable:$true] %s97
      %103 = dma.hbm_to_vmem [thread:$0]  %s8, 8192, %s98, [#allocation11], 256, 256, 16
    $region37: #{pose_encoder_forward.1} parent=1 // pred_fallthru
      _
    // Predicated region
    $region38: #{pose_encoder_forward.1} parent=1 // pred_check
      _
    $region39: #{pose_encoder_forward.1} parent=1 // pred_check_branch
      %105 = sbr.rel (0) target = $region41
    $region40: #{pose_encoder_forward.1} parent=1 // pred_region
      _
    $region41: #{pose_encoder_forward.1} parent=1 // pred_fallthru
      _
    // Predicated region
    $region42: #{pose_encoder_forward.1} parent=1 // pred_check
      _
    $region43: #{pose_encoder_forward.1} parent=1 // pred_check_branch
      %107 = sbr.rel (0) target = $region45
    $region44: #{pose_encoder_forward.1} parent=1 // pred_region
      %s109 = ssub.s32 4096, 4096
      %110 = vsyncadd [#allocation14], %s109
      %s111 = sshll.u32 [#allocation13], 4
      %s112 = int_to_ptr.vmem [resolvable:$true] %s111
      %117 = dma.hbm_to_vmem [thread:$0]  %s10, 4096, %s112, [#allocation14], 64, 64, 4
    $region45: #{pose_encoder_forward.1} parent=1 // pred_fallthru
      _
    // Predicated region
    $region46: #{pose_encoder_forward.1} parent=1 // pred_check
      _
    $region47: #{pose_encoder_forward.1} parent=1 // pred_check_branch
      %119 = sbr.rel (0) target = $region49
    $region48: #{pose_encoder_forward.1} parent=1 // pred_region
      _
    $region49: #{pose_encoder_forward.1} parent=1 // pred_fallthru
      _
    // Predicated region
    $region50: #{pose_encoder_forward.1} parent=1 // pred_check
      _
    $region51: #{pose_encoder_forward.1} parent=1 // pred_check_branch
      %121 = sbr.rel (0) target = $region53
    $region52: #{pose_encoder_forward.1} parent=1 // pred_region
      %122 = dma.done [#allocation3], 128
    $region53: #{pose_encoder_forward.1} parent=1 // pred_fallthru
      _
    // Predicated region
    $region54: #{pose_encoder_forward.1} parent=1 // pred_check
      _
    $region55: #{pose_encoder_forward.1} parent=1 // pred_check_branch
      %124 = sbr.rel (0) target = $region57
    $region56: #{pose_encoder_forward.1} parent=1 // pred_region
      %125 = dma.done [#allocation5], 64
    $region57: #{pose_encoder_forward.1} parent=1 // pred_fallthru
      _
    // Predicated region
    $region58: #{pose_encoder_forward.1} parent=1 // pred_check
      _
    $region59: #{pose_encoder_forward.1} parent=1 // pred_check_branch
      %127 = sbr.rel (0) target = $region61
    $region60: #{pose_encoder_forward.1} parent=1 // pred_region
      %128 = dma.done [#allocation5], 16
    $region61: #{pose_encoder_forward.1} parent=1 // pred_fallthru
      _
    // Predicated region
    $region62: #{pose_encoder_forward.1} parent=1 // pred_check
      _
    $region63: #{pose_encoder_forward.1} parent=1 // pred_check_branch
      %130 = sbr.rel (0) target = $region65
    $region64: #{pose_encoder_forward.1} parent=1 // pred_region
      %131 = dma.done [#allocation8], 704
    $region65: #{pose_encoder_forward.1} parent=1 // pred_fallthru
      _
    // Predicated region
    $region66: #{pose_encoder_forward.1} parent=1 // pred_check
      _
    $region67: #{pose_encoder_forward.1} parent=1 // pred_check_branch
      %133 = sbr.rel (0) target = $region69
    $region68: #{pose_encoder_forward.1} parent=1 // pred_region
      %134 = dma.done [#allocation8], 16
    $region69: #{pose_encoder_forward.1} parent=1 // pred_fallthru
      _
    // Predicated region
    $region70: #{pose_encoder_forward.1} parent=1 // pred_check
      _
    $region71: #{pose_encoder_forward.1} parent=1 // pred_check_branch
      %136 = sbr.rel (0) target = $region73
    $region72: #{pose_encoder_forward.1} parent=1 // pred_region
      %137 = dma.done [#allocation11], 2048
    $region73: #{pose_encoder_forward.1} parent=1 // pred_fallthru
      _
    // Predicated region
    $region74: #{pose_encoder_forward.1} parent=1 // pred_check
      _
    $region75: #{pose_encoder_forward.1} parent=1 // pred_check_branch
      %139 = sbr.rel (0) target = $region77
    $region76: #{pose_encoder_forward.1} parent=1 // pred_region
      %140 = dma.done [#allocation11], 8192
    $region77: #{pose_encoder_forward.1} parent=1 // pred_fallthru
      _
    // Predicated region
    $region78: #{pose_encoder_forward.1} parent=1 // pred_check
      _
    $region79: #{pose_encoder_forward.1} parent=1 // pred_check_branch
      %142 = sbr.rel (0) target = $region81
    $region80: #{pose_encoder_forward.1} parent=1 // pred_region
      %143 = dma.done [#allocation14], 4096
    $region81: #{pose_encoder_forward.1} parent=1 // pred_fallthru
      _
    %v145 = vld [vmem:[#allocation2] sm:$0xff]
    %v146 = vpack.c.bf16 %v145, %v145
    %v147 = vunpack.c.l.bf16 %v146
    %v148 = vsub.f32 %v145, %v147
    %v149 = vpack.c.bf16 %v148, %v148
    %v150 = vld [vmem:[#allocation4] sm:$0xf]
    %vm151 = vcmask 56320
    %v153 = vsel %vm151, %v149, 0
    %vm155 = vcmask 1042432
    %vm156 = vcmask 1043456
    %v157 = vsel %vm155, 4294967295, 65535
    %v158 = vsel %vm156, %v157, 0
    %v160 = vand.u32 %v150, %v158
    %162 = vmatprep.subr.bf16.mxu0 0
    %163 = vmatpush1.bf16.msra.mxu0 0
    %164 = vmatprep.subr.bf16.mxu0 0
    %165 = vmatpush1.bf16.msra.mxu0 0
    %166 = vmatprep.subr.bf16.mxu0 0
    %167 = vmatpush1.bf16.msra.mxu0 0
    %168 = vmatprep.subr.bf16.mxu0 0
    %169 = vmatpush1.bf16.msra.mxu0 0
    %170 = vmatprep.subr.bf16.mxu0 0
    %171 = vmatpush1.bf16.msra.mxu0 0
    %172 = vmatprep.subr.bf16.mxu0 0
    %173 = vmatpush1.bf16.msra.mxu0 0
    %174 = vmatprep.subr.bf16.mxu0 0
    %175 = vmatpush1.bf16.msra.mxu0 0
    %176 = vmatprep.subr.bf16.mxu0 0
    %177 = vmatpush1.bf16.msra.mxu0 %v160
    %178 = vmatprep.subr.bf16.mxu0 0
    %179 = vmatpush2.bf16.msra.mxu0 0
    %180 = vmatprep.subr.bf16.mxu0 0
    %181 = vmatpush2.bf16.msra.mxu0 0
    %182 = vmatprep.subr.bf16.mxu0 0
    %183 = vmatpush2.bf16.msra.mxu0 0
    %184 = vmatprep.subr.bf16.mxu0 0
    %185 = vmatpush2.bf16.msra.mxu0 0
    %186 = vmatprep.subr.bf16.mxu0 0
    %187 = vmatpush2.bf16.msra.mxu0 0
    %188 = vmatprep.subr.bf16.mxu0 0
    %189 = vmatpush2.bf16.msra.mxu0 0
    %190 = vmatprep.subr.bf16.mxu0 0
    %191 = vmatpush2.bf16.msra.mxu0 0
    %192 = vmatprep.subr.bf16.mxu0 0
    %193 = vmatpush2.bf16.msra.mxu0 0
    %194 = vmatprep.mubr.bf16.mxu0 0
    %195 = vmatmul.mubr.bf16.gmra.mxu0 %v153
    %v196 = vpop.f32.mrf.mxu0
    %v197 = vadd.f32 0.0, %v196
    %v198 = vpop.f32.mrf.mxu0
    %v199 = vpop.f32.mrf.mxu0
    %v200 = vpop.f32.mrf.mxu0
    %201 = vdwg.mxu0
    %v203 = vsel %vm151, %v146, 0
    %205 = vmatprep.subr.bf16.mxu0 0
    %206 = vmatpush1.bf16.msra.mxu0 0
    %207 = vmatprep.subr.bf16.mxu0 0
    %208 = vmatpush1.bf16.msra.mxu0 0
    %209 = vmatprep.subr.bf16.mxu0 0
    %210 = vmatpush1.bf16.msra.mxu0 0
    %211 = vmatprep.subr.bf16.mxu0 0
    %212 = vmatpush1.bf16.msra.mxu0 0
    %213 = vmatprep.subr.bf16.mxu0 0
    %214 = vmatpush1.bf16.msra.mxu0 0
    %215 = vmatprep.subr.bf16.mxu0 0
    %216 = vmatpush1.bf16.msra.mxu0 0
    %217 = vmatprep.subr.bf16.mxu0 0
    %218 = vmatpush1.bf16.msra.mxu0 0
    %219 = vmatprep.subr.bf16.mxu0 0
    %220 = vmatpush1.bf16.msra.mxu0 %v160
    %221 = vmatprep.subr.bf16.mxu0 0
    %222 = vmatpush2.bf16.msra.mxu0 0
    %223 = vmatprep.subr.bf16.mxu0 0
    %224 = vmatpush2.bf16.msra.mxu0 0
    %225 = vmatprep.subr.bf16.mxu0 0
    %226 = vmatpush2.bf16.msra.mxu0 0
    %227 = vmatprep.subr.bf16.mxu0 0
    %228 = vmatpush2.bf16.msra.mxu0 0
    %229 = vmatprep.subr.bf16.mxu0 0
    %230 = vmatpush2.bf16.msra.mxu0 0
    %231 = vmatprep.subr.bf16.mxu0 0
    %232 = vmatpush2.bf16.msra.mxu0 0
    %233 = vmatprep.subr.bf16.mxu0 0
    %234 = vmatpush2.bf16.msra.mxu0 0
    %235 = vmatprep.subr.bf16.mxu0 0
    %236 = vmatpush2.bf16.msra.mxu0 0
    %237 = vmatprep.mubr.bf16.mxu0 0
    %238 = vmatmul.mubr.bf16.gmra.mxu0 %v203
    %v239 = vpop.f32.mrf.mxu0
    %v240 = vadd.f32 %v197, %v239
    %v241 = vpop.f32.mrf.mxu0
    %v242 = vpop.f32.mrf.mxu0
    %v243 = vpop.f32.mrf.mxu0
    %244 = vdwg.mxu0
    %v245 = vld [vmem:[#allocation6] sm:$0x1]
    %v247 = vlaneseq
    %v248 = vshrl.u32 %v247, 7
    %v249 = vsub.s32 0, %v248
    %v250 = vrot.slane %v245, %v249
    %v252 = vadd.f32 %v240, %v250
    %v253 = vand.u32 2147483647, %v252
    %vm254 = vcmp.le.f32.partialorder %v253, 0.7853982
    %vm255 = vcmp.lt.s32.totalorder %v252, 0
    %v256 = vand.u32 %v252, 2139095040
    %v257 = vshrl.u32 %v256, 23
    %v258 = vsub.s32 %v257, 127
    %v259 = vand.u32 2147483647, %v252
    %v260 = vand.u32 %v259, 8388607
    %v261 = vor.u32 %v260, 8388608
    %v262 = vsub.s32 0, %v261
    %v263 = vadd.s32 %v258, 1
    %vm264 = vcmp.gt.s32.totalorder %v263, 0
    %v265 = vsel %vm264, %v263, 0
    %v266 = vshrl.u32 %v265, 5
    %v267 = vand.u32 %v265, 31
    %v268 = vsub.s32 32, %v267
    %v269 = vshrl.u32 683565275, %v268
    %v270 = vshll.u32 683565275, %v267
    %v271 = vshrl.u32 2475754826, %v268
    %v272 = vor.u32 %v270, %v271
    %v273 = vshll.u32 2475754826, %v267
    %v274 = vshrl.u32 2131351028, %v268
    %v275 = vor.u32 %v273, %v274
    %v276 = vshll.u32 2131351028, %v267
    %v277 = vshrl.u32 2102212464, %v268
    %v278 = vor.u32 %v276, %v277
    %v279 = vshll.u32 2102212464, %v267
    %v280 = vshrl.u32 920167782, %v268
    %v281 = vor.u32 %v279, %v280
    %v282 = vshll.u32 920167782, %v267
    %v283 = vshrl.u32 1326507024, %v268
    %v284 = vor.u32 %v282, %v283
    %vm285 = vcmp.lt.s32.totalorder %v266, 1
    %vm286 = vcmp.lt.s32.totalorder %v266, 2
    %vm287 = vcmp.lt.s32.totalorder %v266, 3
    %vm288 = vcmp.lt.s32.totalorder %v266, 4
    %v289 = vsel %vm285, %v269, %v272
    %v290 = vsel %vm288, %v278, 2102212464
    %v291 = vsel %vm287, %v275, %v290
    %v292 = vsel %vm286, %v289, %v291
    %v293 = vsel %vm285, %v272, %v275
    %v294 = vsel %vm288, %v281, 920167782
    %v295 = vsel %vm287, %v278, %v294
    %v296 = vsel %vm286, %v293, %v295
    %v297 = vsel %vm285, %v275, %v278
    %v298 = vsel %vm288, %v284, 1326507024
    %v299 = vsel %vm287, %v281, %v298
    %v300 = vsel %vm286, %v297, %v299
    %v301 = vshll.u32 %v261, 8
    %v302 = vmul.u32.u64.compose %v301, %v300
    %v303 = vextract.low.u32 %v302
    %v304 = vextract.high.u32 %v302
    %v305 = vmul.u32.u64.compose %v301, %v296
    %v306 = vextract.low.u32 %v305
    %v307 = vextract.high.u32 %v305
    %v308 = vmul.u32 %v301, %v292
    %v309 = vadd.s32 %v304, %v306
    %vm310 = vc.u32 %v304, %v306
    %v311 = vadd.s32 %v307, 1
    %v312 = vsel %vm310, %v311, %v307
    %v313 = vadd.s32 %v308, %v312
    %v314 = vadd.s32 %v313, 536870912
    %v315 = vshrl.u32 %v314, 30
    %v316 = vshll.u32 %v315, 30
    %v317 = vsub.s32 %v313, %v316
    %vm318 = vcmp.lt.s32.totalorder %v317, 0
    %v319 = vsub.s32 0, %v317
    %v320 = vsel %vm318, %v319, %v317
    %v321 = vclz %v320
    %v322 = vsub.s32 %v321, 2
    %vm323 = vcmp.gt.s32.totalorder 0, %v322
    %v324 = vsel %vm323, 0, %v322
    %v325 = vsub.s32 32, %v324
    %v326 = vshll.u32 %v317, %v324
    %v327 = vshrl.u32 %v309, %v325
    %v328 = vor.u32 %v326, %v327
    %v329 = vsub.s32 4294967266, %v324
    %v330 = vadd.s32 %v329, 127
    %v331 = vshll.u32 %v330, 23
    %v332 = vor.u32 4788187, %v331
    %v333 = vand.u32 2147483647, %v332
    %v335 = vcvt.s32.f32 %v328
    %v336 = vmul.f32 %v335, %v333
    %v337 = vxor.u32 %v336, 2147483648
    %v338 = vsel %vm255, %v337, %v336
    %v339 = vsub.s32 4, %v315
    %v340 = vsel %vm255, %v339, %v315
    %v341 = vsel %vm254, %v252, %v338
    %v342 = vsel %vm254, 0, %v340
    %v343 = vcosq.f32.pop %v341
    %v344 = vsinq.f32.pop %v341
    %vm345 = vweird.f32 %v252
    %v346 = vadd.s32 %v342, 3
    %v347 = vand.u32 %v346, 3
    %vm348 = vcmp.lt.s32.totalorder %v347, 2
    %vm349 = vcmp.eq.s32.totalorder %v347, 0
    %v350 = vxor.u32 %v344, 2147483648
    %v351 = vsel %vm349, %v343, %v350
    %vm352 = vcmp.eq.s32.totalorder %v347, 2
    %v353 = vxor.u32 %v343, 2147483648
    %v354 = vsel %vm352, %v353, %v344
    %v355 = vsel %vm348, %v351, %v354
    %v356 = vsel %vm345, nan, %v355
    %v357 = vld [vmem:[%s3] sm:$0xf]
    %v358 = vpack.c.bf16 %v356, %v356
    %v359 = vld [vmem:[#allocation7] sm:$0xf]
    %v360 = vld [vmem:[#allocation7 + $0x4] sm:$0xf]
    %v361 = vld [vmem:[#allocation7 + $0x8] sm:$0xf]
    %v362 = vld [vmem:[#allocation7 + $0xc] sm:$0xf]
    %v363 = vld [vmem:[#allocation7 + $0x10] sm:$0xf]
    %v364 = vld [vmem:[#allocation7 + $0x14] sm:$0xf]
    %v365 = vld [vmem:[#allocation7 + $0x18] sm:$0xf]
    %v366 = vld [vmem:[#allocation7 + $0x1c] sm:$0xf]
    %v367 = vld [vmem:[#allocation7 + $0x20] sm:$0xf]
    %v368 = vld [vmem:[#allocation7 + $0x24] sm:$0xf]
    %v369 = vld [vmem:[#allocation7 + $0x28] sm:$0x3]
    %v381 = vunpack.c.l.b16 %v359
    %v382 = vunpack.c.l.b16 %v360
    %v383 = vunpack.c.l.b16 %v361
    %v384 = vunpack.c.l.b16 %v362
    %v385 = vunpack.c.l.b16 %v363
    %v386 = vunpack.c.l.b16 %v364
    %v387 = vunpack.c.l.b16 %v365
    %v388 = vunpack.c.l.b16 %v366
    %v389 = vunpack.c.l.b16 %v367
    %v390 = vunpack.c.l.b16 %v368
    %v391 = vunpack.c.l.b16 %v369
    %v392 = vpack.c.b16 %v382, %v381
    %v393 = vpack.c.b16 %v384, %v383
    %v394 = vpack.c.b16 %v386, %v385
    %v395 = vpack.c.b16 %v388, %v387
    %v396 = vpack.c.b16 %v390, %v389
    %v397 = vpack.c.b16 %v391, %v391
    %vm403 = vcmask 687104
    %v405 = vsel %vm403, %v358, 0
    %vm407 = vcmask 1041408
    %v409 = vsel %vm407, %v397, 0
    %411 = vmatprep.subr.bf16.mxu0 0
    %412 = vmatpush1.bf16.msra.mxu0 0
    %413 = vmatprep.subr.bf16.mxu0 0
    %414 = vmatpush1.bf16.msra.mxu0 0
    %415 = vmatprep.subr.bf16.mxu0 0
    %416 = vmatpush1.bf16.msra.mxu0 %v409
    %417 = vmatprep.subr.bf16.mxu0 0
    %418 = vmatpush1.bf16.msra.mxu0 %v396
    %419 = vmatprep.subr.bf16.mxu0 0
    %420 = vmatpush1.bf16.msra.mxu0 %v395
    %421 = vmatprep.subr.bf16.mxu0 0
    %422 = vmatpush1.bf16.msra.mxu0 %v394
    %423 = vmatprep.subr.bf16.mxu0 0
    %424 = vmatpush1.bf16.msra.mxu0 %v393
    %425 = vmatprep.subr.bf16.mxu0 0
    %426 = vmatpush1.bf16.msra.mxu0 %v392
    %427 = vmatprep.subr.bf16.mxu0 0
    %428 = vmatpush2.bf16.msra.mxu0 0
    %429 = vmatprep.subr.bf16.mxu0 0
    %430 = vmatpush2.bf16.msra.mxu0 0
    %431 = vmatprep.subr.bf16.mxu0 0
    %432 = vmatpush2.bf16.msra.mxu0 0
    %433 = vmatprep.subr.bf16.mxu0 0
    %434 = vmatpush2.bf16.msra.mxu0 0
    %435 = vmatprep.subr.bf16.mxu0 0
    %436 = vmatpush2.bf16.msra.mxu0 0
    %437 = vmatprep.subr.bf16.mxu0 0
    %438 = vmatpush2.bf16.msra.mxu0 0
    %439 = vmatprep.subr.bf16.mxu0 0
    %440 = vmatpush2.bf16.msra.mxu0 0
    %441 = vmatprep.subr.bf16.mxu0 0
    %442 = vmatpush2.bf16.msra.mxu0 0
    %443 = vmatprep.mubr.bf16.mxu0 0
    %444 = vmatmul.mubr.bf16.gmra.mxu0 %v405
    %v445 = vpop.f32.mrf.mxu0
    %v446 = vadd.f32 0.0, %v445
    %v447 = vpop.f32.mrf.mxu0
    %v448 = vpop.f32.mrf.mxu0
    %v449 = vpop.f32.mrf.mxu0
    %450 = vdwg.mxu0
    %v452 = vand.u32 %v357, %v158
    %454 = vmatprep.subr.bf16.mxu0 0
    %455 = vmatpush1.bf16.msra.mxu0 0
    %456 = vmatprep.subr.bf16.mxu0 0
    %457 = vmatpush1.bf16.msra.mxu0 0
    %458 = vmatprep.subr.bf16.mxu0 0
    %459 = vmatpush1.bf16.msra.mxu0 0
    %460 = vmatprep.subr.bf16.mxu0 0
    %461 = vmatpush1.bf16.msra.mxu0 0
    %462 = vmatprep.subr.bf16.mxu0 0
    %463 = vmatpush1.bf16.msra.mxu0 0
    %464 = vmatprep.subr.bf16.mxu0 0
    %465 = vmatpush1.bf16.msra.mxu0 0
    %466 = vmatprep.subr.bf16.mxu0 0
    %467 = vmatpush1.bf16.msra.mxu0 0
    %468 = vmatprep.subr.bf16.mxu0 0
    %469 = vmatpush1.bf16.msra.mxu0 %v452
    %470 = vmatprep.subr.bf16.mxu0 0
    %471 = vmatpush2.bf16.msra.mxu0 0
    %472 = vmatprep.subr.bf16.mxu0 0
    %473 = vmatpush2.bf16.msra.mxu0 0
    %474 = vmatprep.subr.bf16.mxu0 0
    %475 = vmatpush2.bf16.msra.mxu0 0
    %476 = vmatprep.subr.bf16.mxu0 0
    %477 = vmatpush2.bf16.msra.mxu0 0
    %478 = vmatprep.subr.bf16.mxu0 0
    %479 = vmatpush2.bf16.msra.mxu0 0
    %480 = vmatprep.subr.bf16.mxu0 0
    %481 = vmatpush2.bf16.msra.mxu0 0
    %482 = vmatprep.subr.bf16.mxu0 0
    %483 = vmatpush2.bf16.msra.mxu0 0
    %484 = vmatprep.subr.bf16.mxu0 0
    %485 = vmatpush2.bf16.msra.mxu0 0
    %486 = vmatprep.mubr.bf16.mxu0 0
    %487 = vmatmul.mubr.bf16.gmra.mxu0 %v203
    %v488 = vpop.f32.mrf.mxu0
    %v489 = vadd.f32 %v446, %v488
    %v490 = vpop.f32.mrf.mxu0
    %v491 = vpop.f32.mrf.mxu0
    %v492 = vpop.f32.mrf.mxu0
    %493 = vdwg.mxu0
    %v494 = vld [vmem:[#allocation9] sm:$0x1]
    %v496 = vlaneseq
    %v497 = vshrl.u32 %v496, 7
    %v498 = vsub.s32 0, %v497
    %v499 = vrot.slane %v494, %v498
    %v501 = vadd.f32 %v489, %v499
    %v502 = vmax.f32 %v501, 0.0
    %v503 = vpack.c.bf16 %v502, %v502
    %v504 = vld [vmem:[#allocation10] sm:$0xff]
    %v505 = vld [vmem:[#allocation10 + $0x8] sm:$0xff]
    %v506 = vld [vmem:[#allocation10 + $0x10] sm:$0xff]
    %v507 = vld [vmem:[#allocation10 + $0x18] sm:$0xff]
    %v508 = vld [vmem:[#allocation10 + $0x20] sm:$0xff]
    %v509 = vld [vmem:[#allocation10 + $0x28] sm:$0xff]
    %v510 = vld [vmem:[#allocation10 + $0x30] sm:$0xff]
    %v511 = vld [vmem:[#allocation10 + $0x38] sm:$0xff]
    %v512 = vld [vmem:[#allocation10 + $0x40] sm:$0xff]
    %v513 = vld [vmem:[#allocation10 + $0x48] sm:$0xff]
    %v514 = vld [vmem:[#allocation10 + $0x50] sm:$0xff]
    %v515 = vld [vmem:[#allocation10 + $0x58] sm:$0xff]
    %v516 = vld [vmem:[#allocation10 + $0x60] sm:$0xff]
    %v517 = vld [vmem:[#allocation10 + $0x68] sm:$0xff]
    %v518 = vld [vmem:[#allocation10 + $0x70] sm:$0xff]
    %v519 = vld [vmem:[#allocation10 + $0x78] sm:$0xff]
    %v520 = vld [vmem:[%s7] sm:$0x3]
    %v522 = vlaneseq
    %v523 = vshrl.u32 %v522, 7
    %v524 = vsub.s32 0, %v523
    %v525 = vrot.slane %v520, %v524
    %v526 = vlaneseq
    %v527 = vshrl.u32 %v526, 7
    %v528 = vsub.s32 1, %v527
    %v529 = vrot.slane %v520, %v528
    %v548 = vunpack.c.l.b16 %v504
    %v549 = vunpack.c.h.b16 %v504
    %v550 = vunpack.c.l.b16 %v505
    %v551 = vunpack.c.h.b16 %v505
    %v552 = vunpack.c.l.b16 %v506
    %v553 = vunpack.c.h.b16 %v506
    %v554 = vunpack.c.l.b16 %v507
    %v555 = vunpack.c.h.b16 %v507
    %v556 = vunpack.c.l.b16 %v508
    %v557 = vunpack.c.h.b16 %v508
    %v558 = vunpack.c.l.b16 %v509
    %v559 = vunpack.c.h.b16 %v509
    %v560 = vunpack.c.l.b16 %v510
    %v561 = vunpack.c.h.b16 %v510
    %v562 = vunpack.c.l.b16 %v511
    %v563 = vunpack.c.h.b16 %v511
    %v564 = vunpack.c.l.b16 %v512
    %v565 = vunpack.c.h.b16 %v512
    %v566 = vunpack.c.l.b16 %v513
    %v567 = vunpack.c.h.b16 %v513
    %v568 = vunpack.c.l.b16 %v514
    %v569 = vunpack.c.h.b16 %v514
    %v570 = vunpack.c.l.b16 %v515
    %v571 = vunpack.c.h.b16 %v515
    %v572 = vunpack.c.l.b16 %v516
    %v573 = vunpack.c.h.b16 %v516
    %v574 = vunpack.c.l.b16 %v517
    %v575 = vunpack.c.h.b16 %v517
    %v576 = vunpack.c.l.b16 %v518
    %v577 = vunpack.c.h.b16 %v518
    %v578 = vunpack.c.l.b16 %v519
    %v579 = vunpack.c.h.b16 %v519
    %v580 = vpack.c.b16 %v550, %v548
    %v581 = vpack.c.b16 %v551, %v549
    %v582 = vpack.c.b16 %v554, %v552
    %v583 = vpack.c.b16 %v555, %v553
    %v584 = vpack.c.b16 %v558, %v556
    %v585 = vpack.c.b16 %v559, %v557
    %v586 = vpack.c.b16 %v562, %v560
    %v587 = vpack.c.b16 %v563, %v561
    %v588 = vpack.c.b16 %v566, %v564
    %v589 = vpack.c.b16 %v567, %v565
    %v590 = vpack.c.b16 %v570, %v568
    %v591 = vpack.c.b16 %v571, %v569
    %v592 = vpack.c.b16 %v574, %v572
    %v593 = vpack.c.b16 %v575, %v573
    %v594 = vpack.c.b16 %v578, %v576
    %v595 = vpack.c.b16 %v579, %v577
    %612 = vmatprep.subr.bf16.mxu0 %v595
    %613 = vmatpush1.bf16.msra.mxu0 %v594
    %614 = vmatprep.subr.bf16.mxu0 %v593
    %615 = vmatpush1.bf16.msra.mxu0 %v592
    %616 = vmatprep.subr.bf16.mxu0 %v591
    %617 = vmatpush1.bf16.msra.mxu0 %v590
    %618 = vmatprep.subr.bf16.mxu0 %v589
    %619 = vmatpush1.bf16.msra.mxu0 %v588
    %620 = vmatprep.subr.bf16.mxu0 %v587
    %621 = vmatpush1.bf16.msra.mxu0 %v586
    %622 = vmatprep.subr.bf16.mxu0 %v585
    %623 = vmatpush1.bf16.msra.mxu0 %v584
    %624 = vmatprep.subr.bf16.mxu0 %v583
    %625 = vmatpush1.bf16.msra.mxu0 %v582
    %626 = vmatprep.subr.bf16.mxu0 %v581
    %627 = vmatpush1.bf16.msra.mxu0 %v580
    %628 = vmatprep.subr.bf16.mxu0 0
    %629 = vmatpush2.bf16.msra.mxu0 0
    %630 = vmatprep.subr.bf16.mxu0 0
    %631 = vmatpush2.bf16.msra.mxu0 0
    %632 = vmatprep.subr.bf16.mxu0 0
    %633 = vmatpush2.bf16.msra.mxu0 0
    %634 = vmatprep.subr.bf16.mxu0 0
    %635 = vmatpush2.bf16.msra.mxu0 0
    %636 = vmatprep.subr.bf16.mxu0 0
    %637 = vmatpush2.bf16.msra.mxu0 0
    %638 = vmatprep.subr.bf16.mxu0 0
    %639 = vmatpush2.bf16.msra.mxu0 0
    %640 = vmatprep.subr.bf16.mxu0 0
    %641 = vmatpush2.bf16.msra.mxu0 0
    %642 = vmatprep.subr.bf16.mxu0 0
    %643 = vmatpush2.bf16.msra.mxu0 0
    %644 = vmatprep.mubr.bf16.mxu0 0
    %645 = vmatmul.mubr.bf16.gmra.mxu0 %v503
    %v646 = vpop.f32.mrf.mxu0
    %v647 = vadd.f32 %v525, %v646
    %v648 = vpop.f32.mrf.mxu0
    %v649 = vadd.f32 %v529, %v648
    %v650 = vpop.f32.mrf.mxu0
    %v651 = vpop.f32.mrf.mxu0
    %652 = vdwg.mxu0
    %v653 = vmax.f32 %v647, 0.0
    %v654 = vmax.f32 %v649, 0.0
    %v655 = vpack.c.bf16 %v653, %v653
    %v656 = vpack.c.bf16 %v654, %v654
    %v657 = vld [vmem:[#allocation12] sm:$0xff]
    %v658 = vld [vmem:[#allocation12 + $0x8] sm:$0xff]
    %v659 = vld [vmem:[#allocation12 + $0x10] sm:$0xff]
    %v660 = vld [vmem:[#allocation12 + $0x18] sm:$0xff]
    %v661 = vld [vmem:[#allocation12 + $0x20] sm:$0xff]
    %v662 = vld [vmem:[#allocation12 + $0x28] sm:$0xff]
    %v663 = vld [vmem:[#allocation12 + $0x30] sm:$0xff]
    %v664 = vld [vmem:[#allocation12 + $0x38] sm:$0xff]
    %v665 = vld [vmem:[#allocation12 + $0x40] sm:$0xff]
    %v666 = vld [vmem:[#allocation12 + $0x48] sm:$0xff]
    %v667 = vld [vmem:[#allocation12 + $0x50] sm:$0xff]
    %v668 = vld [vmem:[#allocation12 + $0x58] sm:$0xff]
    %v669 = vld [vmem:[#allocation12 + $0x60] sm:$0xff]
    %v670 = vld [vmem:[#allocation12 + $0x68] sm:$0xff]
    %v671 = vld [vmem:[#allocation12 + $0x70] sm:$0xff]
    %v672 = vld [vmem:[#allocation12 + $0x78] sm:$0xff]
    %v673 = vld [vmem:[#allocation12 + $0x80] sm:$0xff]
    %v674 = vld [vmem:[#allocation12 + $0x88] sm:$0xff]
    %v675 = vld [vmem:[#allocation12 + $0x90] sm:$0xff]
    %v676 = vld [vmem:[#allocation12 + $0x98] sm:$0xff]
    %v677 = vld [vmem:[#allocation12 + $0xa0] sm:$0xff]
    %v678 = vld [vmem:[#allocation12 + $0xa8] sm:$0xff]
    %v679 = vld [vmem:[#allocation12 + $0xb0] sm:$0xff]
    %v680 = vld [vmem:[#allocation12 + $0xb8] sm:$0xff]
    %v681 = vld [vmem:[#allocation12 + $0xc0] sm:$0xff]
    %v682 = vld [vmem:[#allocation12 + $0xc8] sm:$0xff]
    %v683 = vld [vmem:[#allocation12 + $0xd0] sm:$0xff]
    %v684 = vld [vmem:[#allocation12 + $0xd8] sm:$0xff]
    %v685 = vld [vmem:[#allocation12 + $0xe0] sm:$0xff]
    %v686 = vld [vmem:[#allocation12 + $0xe8] sm:$0xff]
    %v687 = vld [vmem:[#allocation12 + $0xf0] sm:$0xff]
    %v688 = vld [vmem:[#allocation12 + $0xf8] sm:$0xff]
    %v689 = vld [vmem:[#allocation12 + $0x100] sm:$0xff]
    %v690 = vld [vmem:[#allocation12 + $0x108] sm:$0xff]
    %v691 = vld [vmem:[#allocation12 + $0x110] sm:$0xff]
    %v692 = vld [vmem:[#allocation12 + $0x118] sm:$0xff]
    %v693 = vld [vmem:[#allocation12 + $0x120] sm:$0xff]
    %v694 = vld [vmem:[#allocation12 + $0x128] sm:$0xff]
    %v695 = vld [vmem:[#allocation12 + $0x130] sm:$0xff]
    %v696 = vld [vmem:[#allocation12 + $0x138] sm:$0xff]
    %v697 = vld [vmem:[#allocation12 + $0x140] sm:$0xff]
    %v698 = vld [vmem:[#allocation12 + $0x148] sm:$0xff]
    %v699 = vld [vmem:[#allocation12 + $0x150] sm:$0xff]
    %v700 = vld [vmem:[#allocation12 + $0x158] sm:$0xff]
    %v701 = vld [vmem:[#allocation12 + $0x160] sm:$0xff]
    %v702 = vld [vmem:[#allocation12 + $0x168] sm:$0xff]
    %v703 = vld [vmem:[#allocation12 + $0x170] sm:$0xff]
    %v704 = vld [vmem:[#allocation12 + $0x178] sm:$0xff]
    %v705 = vld [vmem:[#allocation12 + $0x180] sm:$0xff]
    %v706 = vld [vmem:[#allocation12 + $0x188] sm:$0xff]
    %v707 = vld [vmem:[#allocation12 + $0x190] sm:$0xff]
    %v708 = vld [vmem:[#allocation12 + $0x198] sm:$0xff]
    %v709 = vld [vmem:[#allocation12 + $0x1a0] sm:$0xff]
    %v710 = vld [vmem:[#allocation12 + $0x1a8] sm:$0xff]
    %v711 = vld [vmem:[#allocation12 + $0x1b0] sm:$0xff]
    %v712 = vld [vmem:[#allocation12 + $0x1b8] sm:$0xff]
    %v713 = vld [vmem:[#allocation12 + $0x1c0] sm:$0xff]
    %v714 = vld [vmem:[#allocation12 + $0x1c8] sm:$0xff]
    %v715 = vld [vmem:[#allocation12 + $0x1d0] sm:$0xff]
    %v716 = vld [vmem:[#allocation12 + $0x1d8] sm:$0xff]
    %v717 = vld [vmem:[#allocation12 + $0x1e0] sm:$0xff]
    %v718 = vld [vmem:[#allocation12 + $0x1e8] sm:$0xff]
    %v719 = vld [vmem:[#allocation12 + $0x1f0] sm:$0xff]
    %v720 = vld [vmem:[#allocation12 + $0x1f8] sm:$0xff]
    %v721 = vld [vmem:[%s9] sm:$0xf]
    %v723 = vlaneseq
    %v724 = vshrl.u32 %v723, 7
    %v725 = vsub.s32 0, %v724
    %v726 = vrot.slane %v721, %v725
    %v727 = vlaneseq
    %v728 = vshrl.u32 %v727, 7
    %v729 = vsub.s32 1, %v728
    %v730 = vrot.slane %v721, %v729
    %v731 = vlaneseq
    %v732 = vshrl.u32 %v731, 7
    %v733 = vsub.s32 2, %v732
    %v734 = vrot.slane %v721, %v733
    %v735 = vlaneseq
    %v736 = vshrl.u32 %v735, 7
    %v737 = vsub.s32 3, %v736
    %v738 = vrot.slane %v721, %v737
    %v807 = vunpack.c.l.b16 %v657
    %v808 = vunpack.c.h.b16 %v657
    %v809 = vunpack.c.l.b16 %v658
    %v810 = vunpack.c.h.b16 %v658
    %v811 = vunpack.c.l.b16 %v659
    %v812 = vunpack.c.h.b16 %v659
    %v813 = vunpack.c.l.b16 %v660
    %v814 = vunpack.c.h.b16 %v660
    %v815 = vunpack.c.l.b16 %v661
    %v816 = vunpack.c.h.b16 %v661
    %v817 = vunpack.c.l.b16 %v662
    %v818 = vunpack.c.h.b16 %v662
    %v819 = vunpack.c.l.b16 %v663
    %v820 = vunpack.c.h.b16 %v663
    %v821 = vunpack.c.l.b16 %v664
    %v822 = vunpack.c.h.b16 %v664
    %v823 = vunpack.c.l.b16 %v665
    %v824 = vunpack.c.h.b16 %v665
    %v825 = vunpack.c.l.b16 %v666
    %v826 = vunpack.c.h.b16 %v666
    %v827 = vunpack.c.l.b16 %v667
    %v828 = vunpack.c.h.b16 %v667
    %v829 = vunpack.c.l.b16 %v668
    %v830 = vunpack.c.h.b16 %v668
    %v831 = vunpack.c.l.b16 %v669
    %v832 = vunpack.c.h.b16 %v669
    %v833 = vunpack.c.l.b16 %v670
    %v834 = vunpack.c.h.b16 %v670
    %v835 = vunpack.c.l.b16 %v671
    %v836 = vunpack.c.h.b16 %v671
    %v837 = vunpack.c.l.b16 %v672
    %v838 = vunpack.c.h.b16 %v672
    %v839 = vunpack.c.l.b16 %v673
    %v840 = vunpack.c.h.b16 %v673
    %v841 = vunpack.c.l.b16 %v674
    %v842 = vunpack.c.h.b16 %v674
    %v843 = vunpack.c.l.b16 %v675
    %v844 = vunpack.c.h.b16 %v675
    %v845 = vunpack.c.l.b16 %v676
    %v846 = vunpack.c.h.b16 %v676
    %v847 = vunpack.c.l.b16 %v677
    %v848 = vunpack.c.h.b16 %v677
    %v849 = vunpack.c.l.b16 %v678
    %v850 = vunpack.c.h.b16 %v678
    %v851 = vunpack.c.l.b16 %v679
    %v852 = vunpack.c.h.b16 %v679
    %v853 = vunpack.c.l.b16 %v680
    %v854 = vunpack.c.h.b16 %v680
    %v855 = vunpack.c.l.b16 %v681
    %v856 = vunpack.c.h.b16 %v681
    %v857 = vunpack.c.l.b16 %v682
    %v858 = vunpack.c.h.b16 %v682
    %v859 = vunpack.c.l.b16 %v683
    %v860 = vunpack.c.h.b16 %v683
    %v861 = vunpack.c.l.b16 %v684
    %v862 = vunpack.c.h.b16 %v684
    %v863 = vunpack.c.l.b16 %v685
    %v864 = vunpack.c.h.b16 %v685
    %v865 = vunpack.c.l.b16 %v686
    %v866 = vunpack.c.h.b16 %v686
    %v867 = vunpack.c.l.b16 %v687
    %v868 = vunpack.c.h.b16 %v687
    %v869 = vunpack.c.l.b16 %v688
    %v870 = vunpack.c.h.b16 %v688
    %v871 = vunpack.c.l.b16 %v689
    %v872 = vunpack.c.h.b16 %v689
    %v873 = vunpack.c.l.b16 %v690
    %v874 = vunpack.c.h.b16 %v690
    %v875 = vunpack.c.l.b16 %v691
    %v876 = vunpack.c.h.b16 %v691
    %v877 = vunpack.c.l.b16 %v692
    %v878 = vunpack.c.h.b16 %v692
    %v879 = vunpack.c.l.b16 %v693
    %v880 = vunpack.c.h.b16 %v693
    %v881 = vunpack.c.l.b16 %v694
    %v882 = vunpack.c.h.b16 %v694
    %v883 = vunpack.c.l.b16 %v695
    %v884 = vunpack.c.h.b16 %v695
    %v885 = vunpack.c.l.b16 %v696
    %v886 = vunpack.c.h.b16 %v696
    %v887 = vunpack.c.l.b16 %v697
    %v888 = vunpack.c.h.b16 %v697
    %v889 = vunpack.c.l.b16 %v698
    %v890 = vunpack.c.h.b16 %v698
    %v891 = vunpack.c.l.b16 %v699
    %v892 = vunpack.c.h.b16 %v699
    %v893 = vunpack.c.l.b16 %v700
    %v894 = vunpack.c.h.b16 %v700
    %v895 = vunpack.c.l.b16 %v701
    %v896 = vunpack.c.h.b16 %v701
    %v897 = vunpack.c.l.b16 %v702
    %v898 = vunpack.c.h.b16 %v702
    %v899 = vunpack.c.l.b16 %v703
    %v900 = vunpack.c.h.b16 %v703
    %v901 = vunpack.c.l.b16 %v704
    %v902 = vunpack.c.h.b16 %v704
    %v903 = vunpack.c.l.b16 %v705
    %v904 = vunpack.c.h.b16 %v705
    %v905 = vunpack.c.l.b16 %v706
    %v906 = vunpack.c.h.b16 %v706
    %v907 = vunpack.c.l.b16 %v707
    %v908 = vunpack.c.h.b16 %v707
    %v909 = vunpack.c.l.b16 %v708
    %v910 = vunpack.c.h.b16 %v708
    %v911 = vunpack.c.l.b16 %v709
    %v912 = vunpack.c.h.b16 %v709
    %v913 = vunpack.c.l.b16 %v710
    %v914 = vunpack.c.h.b16 %v710
    %v915 = vunpack.c.l.b16 %v711
    %v916 = vunpack.c.h.b16 %v711
    %v917 = vunpack.c.l.b16 %v712
    %v918 = vunpack.c.h.b16 %v712
    %v919 = vunpack.c.l.b16 %v713
    %v920 = vunpack.c.h.b16 %v713
    %v921 = vunpack.c.l.b16 %v714
    %v922 = vunpack.c.h.b16 %v714
    %v923 = vunpack.c.l.b16 %v715
    %v924 = vunpack.c.h.b16 %v715
    %v925 = vunpack.c.l.b16 %v716
    %v926 = vunpack.c.h.b16 %v716
    %v927 = vunpack.c.l.b16 %v717
    %v928 = vunpack.c.h.b16 %v717
    %v929 = vunpack.c.l.b16 %v718
    %v930 = vunpack.c.h.b16 %v718
    %v931 = vunpack.c.l.b16 %v719
    %v932 = vunpack.c.h.b16 %v719
    %v933 = vunpack.c.l.b16 %v720
    %v934 = vunpack.c.h.b16 %v720
    %v935 = vpack.c.b16 %v811, %v807
    %v936 = vpack.c.b16 %v812, %v808
    %v937 = vpack.c.b16 %v813, %v809
    %v938 = vpack.c.b16 %v814, %v810
    %v939 = vpack.c.b16 %v819, %v815
    %v940 = vpack.c.b16 %v820, %v816
    %v941 = vpack.c.b16 %v821, %v817
    %v942 = vpack.c.b16 %v822, %v818
    %v943 = vpack.c.b16 %v827, %v823
    %v944 = vpack.c.b16 %v828, %v824
    %v945 = vpack.c.b16 %v829, %v825
    %v946 = vpack.c.b16 %v830, %v826
    %v947 = vpack.c.b16 %v835, %v831
    %v948 = vpack.c.b16 %v836, %v832
    %v949 = vpack.c.b16 %v837, %v833
    %v950 = vpack.c.b16 %v838, %v834
    %v951 = vpack.c.b16 %v843, %v839
    %v952 = vpack.c.b16 %v844, %v840
    %v953 = vpack.c.b16 %v845, %v841
    %v954 = vpack.c.b16 %v846, %v842
    %v955 = vpack.c.b16 %v851, %v847
    %v956 = vpack.c.b16 %v852, %v848
    %v957 = vpack.c.b16 %v853, %v849
    %v958 = vpack.c.b16 %v854, %v850
    %v959 = vpack.c.b16 %v859, %v855
    %v960 = vpack.c.b16 %v860, %v856
    %v961 = vpack.c.b16 %v861, %v857
    %v962 = vpack.c.b16 %v862, %v858
    %v963 = vpack.c.b16 %v867, %v863
    %v964 = vpack.c.b16 %v868, %v864
    %v965 = vpack.c.b16 %v869, %v865
    %v966 = vpack.c.b16 %v870, %v866
    %v967 = vpack.c.b16 %v875, %v871
    %v968 = vpack.c.b16 %v876, %v872
    %v969 = vpack.c.b16 %v877, %v873
    %v970 = vpack.c.b16 %v878, %v874
    %v971 = vpack.c.b16 %v883, %v879
    %v972 = vpack.c.b16 %v884, %v880
    %v973 = vpack.c.b16 %v885, %v881
    %v974 = vpack.c.b16 %v886, %v882
    %v975 = vpack.c.b16 %v891, %v887
    %v976 = vpack.c.b16 %v892, %v888
    %v977 = vpack.c.b16 %v893, %v889
    %v978 = vpack.c.b16 %v894, %v890
    %v979 = vpack.c.b16 %v899, %v895
    %v980 = vpack.c.b16 %v900, %v896
    %v981 = vpack.c.b16 %v901, %v897
    %v982 = vpack.c.b16 %v902, %v898
    %v983 = vpack.c.b16 %v907, %v903
    %v984 = vpack.c.b16 %v908, %v904
    %v985 = vpack.c.b16 %v909, %v905
    %v986 = vpack.c.b16 %v910, %v906
    %v987 = vpack.c.b16 %v915, %v911
    %v988 = vpack.c.b16 %v916, %v912
    %v989 = vpack.c.b16 %v917, %v913
    %v990 = vpack.c.b16 %v918, %v914
    %v991 = vpack.c.b16 %v923, %v919
    %v992 = vpack.c.b16 %v924, %v920
    %v993 = vpack.c.b16 %v925, %v921
    %v994 = vpack.c.b16 %v926, %v922
    %v995 = vpack.c.b16 %v931, %v927
    %v996 = vpack.c.b16 %v932, %v928
    %v997 = vpack.c.b16 %v933, %v929
    %v998 = vpack.c.b16 %v934, %v930
    %1063 = vmatprep.subr.bf16.mxu0 %v964
    %1064 = vmatpush1.bf16.msra.mxu0 %v963
    %1065 = vmatprep.subr.bf16.mxu0 %v960
    %1066 = vmatpush1.bf16.msra.mxu0 %v959
    %1067 = vmatprep.subr.bf16.mxu0 %v956
    %1068 = vmatpush1.bf16.msra.mxu0 %v955
    %1069 = vmatprep.subr.bf16.mxu0 %v952
    %1070 = vmatpush1.bf16.msra.mxu0 %v951
    %1071 = vmatprep.subr.bf16.mxu0 %v948
    %1072 = vmatpush1.bf16.msra.mxu0 %v947
    %1073 = vmatprep.subr.bf16.mxu0 %v944
    %1074 = vmatpush1.bf16.msra.mxu0 %v943
    %1075 = vmatprep.subr.bf16.mxu0 %v940
    %1076 = vmatpush1.bf16.msra.mxu0 %v939
    %1077 = vmatprep.subr.bf16.mxu0 %v936
    %1078 = vmatpush1.bf16.msra.mxu0 %v935
    %1079 = vmatprep.subr.bf16.mxu0 %v996
    %1080 = vmatpush2.bf16.msra.mxu0 %v995
    %1081 = vmatprep.subr.bf16.mxu0 %v992
    %1082 = vmatpush2.bf16.msra.mxu0 %v991
    %1083 = vmatprep.subr.bf16.mxu0 %v988
    %1084 = vmatpush2.bf16.msra.mxu0 %v987
    %1085 = vmatprep.subr.bf16.mxu0 %v984
    %1086 = vmatpush2.bf16.msra.mxu0 %v983
    %1087 = vmatprep.subr.bf16.mxu0 %v980
    %1088 = vmatpush2.bf16.msra.mxu0 %v979
    %1089 = vmatprep.subr.bf16.mxu0 %v976
    %1090 = vmatpush2.bf16.msra.mxu0 %v975
    %1091 = vmatprep.subr.bf16.mxu0 %v972
    %1092 = vmatpush2.bf16.msra.mxu0 %v971
    %1093 = vmatprep.subr.bf16.mxu0 %v968
    %1094 = vmatpush2.bf16.msra.mxu0 %v967
    %1095 = vmatprep.mubr.bf16.mxu0 %v656
    %1096 = vmatmul.mubr.bf16.gmra.mxu0 %v655
    %v1097 = vpop.f32.mrf.mxu0
    %v1098 = vadd.f32 %v726, %v1097
    %v1099 = vpop.f32.mrf.mxu0
    %v1100 = vadd.f32 %v730, %v1099
    %v1101 = vpop.f32.mrf.mxu0
    %v1102 = vpop.f32.mrf.mxu0
    %1103 = vdwg.mxu0
    %1104 = vmatprep.subr.bf16.mxu0 %v966
    %1105 = vmatpush1.bf16.msra.mxu0 %v965
    %1106 = vmatprep.subr.bf16.mxu0 %v962
    %1107 = vmatpush1.bf16.msra.mxu0 %v961
    %1108 = vmatprep.subr.bf16.mxu0 %v958
    %1109 = vmatpush1.bf16.msra.mxu0 %v957
    %1110 = vmatprep.subr.bf16.mxu0 %v954
    %1111 = vmatpush1.bf16.msra.mxu0 %v953
    %1112 = vmatprep.subr.bf16.mxu0 %v950
    %1113 = vmatpush1.bf16.msra.mxu0 %v949
    %1114 = vmatprep.subr.bf16.mxu0 %v946
    %1115 = vmatpush1.bf16.msra.mxu0 %v945
    %1116 = vmatprep.subr.bf16.mxu0 %v942
    %1117 = vmatpush1.bf16.msra.mxu0 %v941
    %1118 = vmatprep.subr.bf16.mxu0 %v938
    %1119 = vmatpush1.bf16.msra.mxu0 %v937
    %1120 = vmatprep.subr.bf16.mxu0 %v998
    %1121 = vmatpush2.bf16.msra.mxu0 %v997
    %1122 = vmatprep.subr.bf16.mxu0 %v994
    %1123 = vmatpush2.bf16.msra.mxu0 %v993
    %1124 = vmatprep.subr.bf16.mxu0 %v990
    %1125 = vmatpush2.bf16.msra.mxu0 %v989
    %1126 = vmatprep.subr.bf16.mxu0 %v986
    %1127 = vmatpush2.bf16.msra.mxu0 %v985
    %1128 = vmatprep.subr.bf16.mxu0 %v982
    %1129 = vmatpush2.bf16.msra.mxu0 %v981
    %1130 = vmatprep.subr.bf16.mxu0 %v978
    %1131 = vmatpush2.bf16.msra.mxu0 %v977
    %1132 = vmatprep.subr.bf16.mxu0 %v974
    %1133 = vmatpush2.bf16.msra.mxu0 %v973
    %1134 = vmatprep.subr.bf16.mxu0 %v970
    %1135 = vmatpush2.bf16.msra.mxu0 %v969
    %1136 = vmatprep.mubr.bf16.mxu0 %v656
    %1137 = vmatmul.mubr.bf16.gmra.mxu0 %v655
    %v1138 = vpop.f32.mrf.mxu0
    %v1139 = vadd.f32 %v734, %v1138
    %v1140 = vpop.f32.mrf.mxu0
    %v1141 = vadd.f32 %v738, %v1140
    %v1142 = vpop.f32.mrf.mxu0
    %v1143 = vpop.f32.mrf.mxu0
    %1144 = vdwg.mxu0
    %v1145 = vmax.f32 %v1098, 0.0
    %v1146 = vmax.f32 %v1100, 0.0
    %v1147 = vmax.f32 %v1139, 0.0
    %v1148 = vmax.f32 %v1141, 0.0
    %v1149 = vpack.c.bf16 %v1145, %v1145
    %v1150 = vpack.c.bf16 %v1146, %v1146
    %v1151 = vpack.c.bf16 %v1147, %v1147
    %v1152 = vpack.c.bf16 %v1148, %v1148
    %v1153 = vld [vmem:[#allocation13] sm:$0xf]
    %v1154 = vld [vmem:[#allocation13 + $0x4] sm:$0xf]
    %v1155 = vld [vmem:[#allocation13 + $0x8] sm:$0xf]
    %v1156 = vld [vmem:[#allocation13 + $0xc] sm:$0xf]
    %v1157 = vld [vmem:[#allocation13 + $0x10] sm:$0xf]
    %v1158 = vld [vmem:[#allocation13 + $0x14] sm:$0xf]
    %v1159 = vld [vmem:[#allocation13 + $0x18] sm:$0xf]
    %v1160 = vld [vmem:[#allocation13 + $0x1c] sm:$0xf]
    %v1161 = vld [vmem:[#allocation13 + $0x20] sm:$0xf]
    %v1162 = vld [vmem:[#allocation13 + $0x24] sm:$0xf]
    %v1163 = vld [vmem:[#allocation13 + $0x28] sm:$0xf]
    %v1164 = vld [vmem:[#allocation13 + $0x2c] sm:$0xf]
    %v1165 = vld [vmem:[#allocation13 + $0x30] sm:$0xf]
    %v1166 = vld [vmem:[#allocation13 + $0x34] sm:$0xf]
    %v1167 = vld [vmem:[#allocation13 + $0x38] sm:$0xf]
    %v1168 = vld [vmem:[#allocation13 + $0x3c] sm:$0xf]
    %v1169 = vld [vmem:[#allocation13 + $0x40] sm:$0xf]
    %v1170 = vld [vmem:[#allocation13 + $0x44] sm:$0xf]
    %v1171 = vld [vmem:[#allocation13 + $0x48] sm:$0xf]
    %v1172 = vld [vmem:[#allocation13 + $0x4c] sm:$0xf]
    %v1173 = vld [vmem:[#allocation13 + $0x50] sm:$0xf]
    %v1174 = vld [vmem:[#allocation13 + $0x54] sm:$0xf]
    %v1175 = vld [vmem:[#allocation13 + $0x58] sm:$0xf]
    %v1176 = vld [vmem:[#allocation13 + $0x5c] sm:$0xf]
    %v1177 = vld [vmem:[#allocation13 + $0x60] sm:$0xf]
    %v1178 = vld [vmem:[#allocation13 + $0x64] sm:$0xf]
    %v1179 = vld [vmem:[#allocation13 + $0x68] sm:$0xf]
    %v1180 = vld [vmem:[#allocation13 + $0x6c] sm:$0xf]
    %v1181 = vld [vmem:[#allocation13 + $0x70] sm:$0xf]
    %v1182 = vld [vmem:[#allocation13 + $0x74] sm:$0xf]
    %v1183 = vld [vmem:[#allocation13 + $0x78] sm:$0xf]
    %v1184 = vld [vmem:[#allocation13 + $0x7c] sm:$0xf]
    %v1185 = vld [vmem:[#allocation13 + $0x80] sm:$0xf]
    %v1186 = vld [vmem:[#allocation13 + $0x84] sm:$0xf]
    %v1187 = vld [vmem:[#allocation13 + $0x88] sm:$0xf]
    %v1188 = vld [vmem:[#allocation13 + $0x8c] sm:$0xf]
    %v1189 = vld [vmem:[#allocation13 + $0x90] sm:$0xf]
    %v1190 = vld [vmem:[#allocation13 + $0x94] sm:$0xf]
    %v1191 = vld [vmem:[#allocation13 + $0x98] sm:$0xf]
    %v1192 = vld [vmem:[#allocation13 + $0x9c] sm:$0xf]
    %v1193 = vld [vmem:[#allocation13 + $0xa0] sm:$0xf]
    %v1194 = vld [vmem:[#allocation13 + $0xa4] sm:$0xf]
    %v1195 = vld [vmem:[#allocation13 + $0xa8] sm:$0xf]
    %v1196 = vld [vmem:[#allocation13 + $0xac] sm:$0xf]
    %v1197 = vld [vmem:[#allocation13 + $0xb0] sm:$0xf]
    %v1198 = vld [vmem:[#allocation13 + $0xb4] sm:$0xf]
    %v1199 = vld [vmem:[#allocation13 + $0xb8] sm:$0xf]
    %v1200 = vld [vmem:[#allocation13 + $0xbc] sm:$0xf]
    %v1201 = vld [vmem:[#allocation13 + $0xc0] sm:$0xf]
    %v1202 = vld [vmem:[#allocation13 + $0xc4] sm:$0xf]
    %v1203 = vld [vmem:[#allocation13 + $0xc8] sm:$0xf]
    %v1204 = vld [vmem:[#allocation13 + $0xcc] sm:$0xf]
    %v1205 = vld [vmem:[#allocation13 + $0xd0] sm:$0xf]
    %v1206 = vld [vmem:[#allocation13 + $0xd4] sm:$0xf]
    %v1207 = vld [vmem:[#allocation13 + $0xd8] sm:$0xf]
    %v1208 = vld [vmem:[#allocation13 + $0xdc] sm:$0xf]
    %v1209 = vld [vmem:[#allocation13 + $0xe0] sm:$0xf]
    %v1210 = vld [vmem:[#allocation13 + $0xe4] sm:$0xf]
    %v1211 = vld [vmem:[#allocation13 + $0xe8] sm:$0xf]
    %v1212 = vld [vmem:[#allocation13 + $0xec] sm:$0xf]
    %v1213 = vld [vmem:[#allocation13 + $0xf0] sm:$0xf]
    %v1214 = vld [vmem:[#allocation13 + $0xf4] sm:$0xf]
    %v1215 = vld [vmem:[#allocation13 + $0xf8] sm:$0xf]
    %v1216 = vld [vmem:[#allocation13 + $0xfc] sm:$0xf]
    %v1217 = vld [vmem:[%s11] sm:$0x1]
    %v1219 = vlaneseq
    %v1220 = vshrl.u32 %v1219, 7
    %v1221 = vsub.s32 0, %v1220
    %v1222 = vrot.slane %v1217, %v1221
    %v1288 = vunpack.c.l.b16 %v1153
    %v1289 = vunpack.c.l.b16 %v1154
    %v1290 = vunpack.c.l.b16 %v1155
    %v1291 = vunpack.c.l.b16 %v1156
    %v1292 = vunpack.c.l.b16 %v1157
    %v1293 = vunpack.c.l.b16 %v1158
    %v1294 = vunpack.c.l.b16 %v1159
    %v1295 = vunpack.c.l.b16 %v1160
    %v1296 = vunpack.c.l.b16 %v1161
    %v1297 = vunpack.c.l.b16 %v1162
    %v1298 = vunpack.c.l.b16 %v1163
    %v1299 = vunpack.c.l.b16 %v1164
    %v1300 = vunpack.c.l.b16 %v1165
    %v1301 = vunpack.c.l.b16 %v1166
    %v1302 = vunpack.c.l.b16 %v1167
    %v1303 = vunpack.c.l.b16 %v1168
    %v1304 = vunpack.c.l.b16 %v1169
    %v1305 = vunpack.c.l.b16 %v1170
    %v1306 = vunpack.c.l.b16 %v1171
    %v1307 = vunpack.c.l.b16 %v1172
    %v1308 = vunpack.c.l.b16 %v1173
    %v1309 = vunpack.c.l.b16 %v1174
    %v1310 = vunpack.c.l.b16 %v1175
    %v1311 = vunpack.c.l.b16 %v1176
    %v1312 = vunpack.c.l.b16 %v1177
    %v1313 = vunpack.c.l.b16 %v1178
    %v1314 = vunpack.c.l.b16 %v1179
    %v1315 = vunpack.c.l.b16 %v1180
    %v1316 = vunpack.c.l.b16 %v1181
    %v1317 = vunpack.c.l.b16 %v1182
    %v1318 = vunpack.c.l.b16 %v1183
    %v1319 = vunpack.c.l.b16 %v1184
    %v1320 = vunpack.c.l.b16 %v1185
    %v1321 = vunpack.c.l.b16 %v1186
    %v1322 = vunpack.c.l.b16 %v1187
    %v1323 = vunpack.c.l.b16 %v1188
    %v1324 = vunpack.c.l.b16 %v1189
    %v1325 = vunpack.c.l.b16 %v1190
    %v1326 = vunpack.c.l.b16 %v1191
    %v1327 = vunpack.c.l.b16 %v1192
    %v1328 = vunpack.c.l.b16 %v1193
    %v1329 = vunpack.c.l.b16 %v1194
    %v1330 = vunpack.c.l.b16 %v1195
    %v1331 = vunpack.c.l.b16 %v1196
    %v1332 = vunpack.c.l.b16 %v1197
    %v1333 = vunpack.c.l.b16 %v1198
    %v1334 = vunpack.c.l.b16 %v1199
    %v1335 = vunpack.c.l.b16 %v1200
    %v1336 = vunpack.c.l.b16 %v1201
    %v1337 = vunpack.c.l.b16 %v1202
    %v1338 = vunpack.c.l.b16 %v1203
    %v1339 = vunpack.c.l.b16 %v1204
    %v1340 = vunpack.c.l.b16 %v1205
    %v1341 = vunpack.c.l.b16 %v1206
    %v1342 = vunpack.c.l.b16 %v1207
    %v1343 = vunpack.c.l.b16 %v1208
    %v1344 = vunpack.c.l.b16 %v1209
    %v1345 = vunpack.c.l.b16 %v1210
    %v1346 = vunpack.c.l.b16 %v1211
    %v1347 = vunpack.c.l.b16 %v1212
    %v1348 = vunpack.c.l.b16 %v1213
    %v1349 = vunpack.c.l.b16 %v1214
    %v1350 = vunpack.c.l.b16 %v1215
    %v1351 = vunpack.c.l.b16 %v1216
    %v1352 = vpack.c.b16 %v1289, %v1288
    %v1353 = vpack.c.b16 %v1291, %v1290
    %v1354 = vpack.c.b16 %v1293, %v1292
    %v1355 = vpack.c.b16 %v1295, %v1294
    %v1356 = vpack.c.b16 %v1297, %v1296
    %v1357 = vpack.c.b16 %v1299, %v1298
    %v1358 = vpack.c.b16 %v1301, %v1300
    %v1359 = vpack.c.b16 %v1303, %v1302
    %v1360 = vpack.c.b16 %v1305, %v1304
    %v1361 = vpack.c.b16 %v1307, %v1306
    %v1362 = vpack.c.b16 %v1309, %v1308
    %v1363 = vpack.c.b16 %v1311, %v1310
    %v1364 = vpack.c.b16 %v1313, %v1312
    %v1365 = vpack.c.b16 %v1315, %v1314
    %v1366 = vpack.c.b16 %v1317, %v1316
    %v1367 = vpack.c.b16 %v1319, %v1318
    %v1368 = vpack.c.b16 %v1321, %v1320
    %v1369 = vpack.c.b16 %v1323, %v1322
    %v1370 = vpack.c.b16 %v1325, %v1324
    %v1371 = vpack.c.b16 %v1327, %v1326
    %v1372 = vpack.c.b16 %v1329, %v1328
    %v1373 = vpack.c.b16 %v1331, %v1330
    %v1374 = vpack.c.b16 %v1333, %v1332
    %v1375 = vpack.c.b16 %v1335, %v1334
    %v1376 = vpack.c.b16 %v1337, %v1336
    %v1377 = vpack.c.b16 %v1339, %v1338
    %v1378 = vpack.c.b16 %v1341, %v1340
    %v1379 = vpack.c.b16 %v1343, %v1342
    %v1380 = vpack.c.b16 %v1345, %v1344
    %v1381 = vpack.c.b16 %v1347, %v1346
    %v1382 = vpack.c.b16 %v1349, %v1348
    %v1383 = vpack.c.b16 %v1351, %v1350
    %1416 = vmatprep.subr.bf16.mxu0 0
    %1417 = vmatpush1.bf16.msra.mxu0 %v1359
    %1418 = vmatprep.subr.bf16.mxu0 0
    %1419 = vmatpush1.bf16.msra.mxu0 %v1358
    %1420 = vmatprep.subr.bf16.mxu0 0
    %1421 = vmatpush1.bf16.msra.mxu0 %v1357
    %1422 = vmatprep.subr.bf16.mxu0 0
    %1423 = vmatpush1.bf16.msra.mxu0 %v1356
    %1424 = vmatprep.subr.bf16.mxu0 0
    %1425 = vmatpush1.bf16.msra.mxu0 %v1355
    %1426 = vmatprep.subr.bf16.mxu0 0
    %1427 = vmatpush1.bf16.msra.mxu0 %v1354
    %1428 = vmatprep.subr.bf16.mxu0 0
    %1429 = vmatpush1.bf16.msra.mxu0 %v1353
    %1430 = vmatprep.subr.bf16.mxu0 0
    %1431 = vmatpush1.bf16.msra.mxu0 %v1352
    %1432 = vmatprep.subr.bf16.mxu0 0
    %1433 = vmatpush2.bf16.msra.mxu0 %v1367
    %1434 = vmatprep.subr.bf16.mxu0 0
    %1435 = vmatpush2.bf16.msra.mxu0 %v1366
    %1436 = vmatprep.subr.bf16.mxu0 0
    %1437 = vmatpush2.bf16.msra.mxu0 %v1365
    %1438 = vmatprep.subr.bf16.mxu0 0
    %1439 = vmatpush2.bf16.msra.mxu0 %v1364
    %1440 = vmatprep.subr.bf16.mxu0 0
    %1441 = vmatpush2.bf16.msra.mxu0 %v1363
    %1442 = vmatprep.subr.bf16.mxu0 0
    %1443 = vmatpush2.bf16.msra.mxu0 %v1362
    %1444 = vmatprep.subr.bf16.mxu0 0
    %1445 = vmatpush2.bf16.msra.mxu0 %v1361
    %1446 = vmatprep.subr.bf16.mxu0 0
    %1447 = vmatpush2.bf16.msra.mxu0 %v1360
    %1448 = vmatprep.mubr.bf16.mxu0 %v1150
    %1449 = vmatmul.mubr.bf16.gmra.mxu0 %v1149
    %v1450 = vpop.f32.mrf.mxu0
    %v1451 = vadd.f32 %v1222, %v1450
    %v1452 = vpop.f32.mrf.mxu0
    %v1453 = vpop.f32.mrf.mxu0
    %v1454 = vpop.f32.mrf.mxu0
    %1455 = vdwg.mxu0
    %1456 = vmatprep.subr.bf16.mxu0 0
    %1457 = vmatpush1.bf16.msra.mxu0 %v1375
    %1458 = vmatprep.subr.bf16.mxu0 0
    %1459 = vmatpush1.bf16.msra.mxu0 %v1374
    %1460 = vmatprep.subr.bf16.mxu0 0
    %1461 = vmatpush1.bf16.msra.mxu0 %v1373
    %1462 = vmatprep.subr.bf16.mxu0 0
    %1463 = vmatpush1.bf16.msra.mxu0 %v1372
    %1464 = vmatprep.subr.bf16.mxu0 0
    %1465 = vmatpush1.bf16.msra.mxu0 %v1371
    %1466 = vmatprep.subr.bf16.mxu0 0
    %1467 = vmatpush1.bf16.msra.mxu0 %v1370
    %1468 = vmatprep.subr.bf16.mxu0 0
    %1469 = vmatpush1.bf16.msra.mxu0 %v1369
    %1470 = vmatprep.subr.bf16.mxu0 0
    %1471 = vmatpush1.bf16.msra.mxu0 %v1368
    %1472 = vmatprep.subr.bf16.mxu0 0
    %1473 = vmatpush2.bf16.msra.mxu0 %v1383
    %1474 = vmatprep.subr.bf16.mxu0 0
    %1475 = vmatpush2.bf16.msra.mxu0 %v1382
    %1476 = vmatprep.subr.bf16.mxu0 0
    %1477 = vmatpush2.bf16.msra.mxu0 %v1381
    %1478 = vmatprep.subr.bf16.mxu0 0
    %1479 = vmatpush2.bf16.msra.mxu0 %v1380
    %1480 = vmatprep.subr.bf16.mxu0 0
    %1481 = vmatpush2.bf16.msra.mxu0 %v1379
    %1482 = vmatprep.subr.bf16.mxu0 0
    %1483 = vmatpush2.bf16.msra.mxu0 %v1378
    %1484 = vmatprep.subr.bf16.mxu0 0
    %1485 = vmatpush2.bf16.msra.mxu0 %v1377
    %1486 = vmatprep.subr.bf16.mxu0 0
    %1487 = vmatpush2.bf16.msra.mxu0 %v1376
    %1488 = vmatprep.mubr.bf16.mxu0 %v1152
    %1489 = vmatmul.mubr.bf16.gmra.mxu0 %v1151
    %v1490 = vpop.f32.mrf.mxu0
    %v1491 = vadd.f32 %v1451, %v1490
    %v1492 = vpop.f32.mrf.mxu0
    %v1493 = vpop.f32.mrf.mxu0
    %v1494 = vpop.f32.mrf.mxu0
    %1495 = vdwg.mxu0
    %1496 = vst [vmem:[#allocation15] sm:$0xff] %v1491
    // Predicated region
    $region82: #{pose_encoder_forward.1} parent=1 // pred_check
      _
    $region83: #{pose_encoder_forward.1} parent=1 // pred_check_branch
      %1498 = sbr.rel (0) target = $region85
    $region84: #{pose_encoder_forward.1} parent=1 // pred_region
      // Predicated region
      $region86: #{pose_encoder_forward.1} parent=84 // pred_check
        _
      $region87: #{pose_encoder_forward.1} parent=84 // pred_check_branch
        %1500 = sbr.rel (0) target = $region89
      $region88: #{pose_encoder_forward.1} parent=84 // pred_region
        // Predicated region
        $region90: #{pose_encoder_forward.1} parent=88 // pred_check
          _
        $region91: #{pose_encoder_forward.1} parent=88 // pred_check_branch
          %1502 = sbr.rel target = $region93
        $region92: #{pose_encoder_forward.1} parent=88 // pred_region
          // Predicated region
          $region105: #{pose_encoder_forward.1} parent=92 // pred_check
            _
          $region106: #{pose_encoder_forward.1} parent=92 // pred_check_branch
            %1518 = sbr.rel (0) target = $region108
          $region107: #{pose_encoder_forward.1} parent=92 // pred_region
            %s1520 = ssub.s32 4, 1
            loop: start=0, step=1, limit=1
            $region109: #{pose_encoder_forward.1} parent=107 // loop_pre_header
              _
            $region110: #{pose_encoder_forward.1} parent=107 // loop_header
              %s1522 = sphi 0, %s1526
              %p1523 = scmp.ge.s32.totalorder %s1522, 1
              %s1527 = sphi [#allocation15], [#allocation15]
              %s1528 = sphi %s12, %s12
            $region111: #{pose_encoder_forward.1} parent=107 // loop_header_branch
              %1525 = sbr.rel (%p1523) target = $region115
            $region112: #{pose_encoder_forward.1} parent=107 // loop_body
              %v1529 = vld [vmem:[%s1527] sm:%s1520]
              %1530 = vst [vmem:[%s1528] sm:%s1520] %v1529
            $region113: #{pose_encoder_forward.1} parent=107 // loop_footer
              %s1526 = sadd.s32 1, %s1522
            $region114: #{pose_encoder_forward.1} parent=107 // loop_footer_branch
              %1521 = sbr.rel target = $region110
            $region115: #{pose_encoder_forward.1} parent=107 // loop_exit
              _
          $region108: #{pose_encoder_forward.1} parent=92 // pred_fallthru
            _
        $region93: #{pose_encoder_forward.1} parent=88 // pred_fallthru
          _
        // Predicated region
        $region94: #{pose_encoder_forward.1} parent=88 // pred_check
          _
        $region95: #{pose_encoder_forward.1} parent=88 // pred_check_branch
          %1504 = sbr.rel (0) target = $region97
        $region96: #{pose_encoder_forward.1} parent=88 // pred_region
          %s1506 = ssub.s32 4, 1
          loop: start=0, step=1, limit=1
          $region98: #{pose_encoder_forward.1} parent=96 // loop_pre_header
            _
          $region99: #{pose_encoder_forward.1} parent=96 // loop_header
            %s1508 = sphi 0, %s1512
            %p1509 = scmp.ge.s32.totalorder %s1508, 1
            %s1513 = sphi [#allocation15], [#allocation15]
            %s1514 = sphi %s12, %s12
          $region100: #{pose_encoder_forward.1} parent=96 // loop_header_branch
            %1511 = sbr.rel (%p1509) target = $region104
          $region101: #{pose_encoder_forward.1} parent=96 // loop_body
            %v1515 = vld [vmem:[%s1513] sm:%s1506]
            %1516 = vst [vmem:[%s1514] sm:%s1506] %v1515
          $region102: #{pose_encoder_forward.1} parent=96 // loop_footer
            %s1512 = sadd.s32 1, %s1508
          $region103: #{pose_encoder_forward.1} parent=96 // loop_footer_branch
            %1507 = sbr.rel target = $region99
          $region104: #{pose_encoder_forward.1} parent=96 // loop_exit
            _
        $region97: #{pose_encoder_forward.1} parent=88 // pred_fallthru
          _
      $region89: #{pose_encoder_forward.1} parent=84 // pred_fallthru
        _
      %1531 = vnop
    $region85: #{pose_encoder_forward.1} parent=1 // pred_fallthru
      _
    // Predicated region
    $region116: #{pose_encoder_forward.1} parent=1 // pred_check
      _
    $region117: #{pose_encoder_forward.1} parent=1 // pred_check_branch
      %1533 = sbr.rel (0) target = $region119
    $region118: #{pose_encoder_forward.1} parent=1 // pred_region
      _
    $region119: #{pose_encoder_forward.1} parent=1 // pred_fallthru
      _
    %1534 = vsyncpa [#allocation3], 1
    %1535 = vsyncpa [#allocation5], 1
    %1536 = vsyncpa [#allocation8], 1
    %1537 = vsyncpa [#allocation11], 1
    %1538 = vsyncpa [#allocation14], 1

</llo_original>
